<compile_context>
chip_gen: v5e
topology: v5e:2x2
jax: 0.10.0
libtpu: 0.0.40
codegen_flags: <defaults>
</compile_context>

<pallas_src>
import jax
import jax.numpy as jnp
from jax import lax
from jax.experimental import pallas as pl
from jax.experimental.pallas import tpu as pltpu


# ---------------------------------------------------------------------------
# Kernels
# ---------------------------------------------------------------------------
def _conv3x3_s2_kernel(xm_ref, xh_ref, w_ref, b_ref, o_ref):
    """3x3 conv, stride 2, padding 1 — one (image, row-tile) block per step.

    xm_ref: (1, 4, tH, Wp, C)  space-to-depth parity planes (p = 2*(r%2)+(c%2))
                               of the zero-padded NHWC image, rows [r*tH, r*tH+tH)
    xh_ref: (1, 2, 1, Wp, C)   halo: plane rows r*tH+tH of planes 0/1 (kh==2 taps)
    w_ref : (9*C, C)           rows [k*C, (k+1)*C) = tap k = kh*3+kw, (Cin, Cout)
    b_ref : (1, C)             float32 bias
    o_ref : (1, tH, Wo, C)
    """
    tH, Wo, C = o_ref.shape[1], o_ref.shape[2], o_ref.shape[3]

    p0 = xm_ref[0, 0]
    p1 = xm_ref[0, 1]
    p2 = xm_ref[0, 2]
    p3 = xm_ref[0, 3]
    # Planes 0/1 shifted down one output row (for kh == 2); the last row comes
    # from the 1-row halo block.  Major-axis slice + concat: no sublane relayout.
    if tH > 1:
        p0d = jnp.concatenate([p0[1:], xh_ref[0, 0]], axis=0)
        p1d = jnp.concatenate([p1[1:], xh_ref[0, 1]], axis=0)
    else:
        p0d, p1d = xh_ref[0, 0], xh_ref[0, 1]

    # padded_x[2h+kh, 2w+kw] == plane[2*(kh%2)+(kw%2)][h + kh//2, w + kw//2]
    taps = (
        p0[:, :Wo], p1[:, :Wo], p0[:, 1:Wo + 1],       # kh = 0
        p2[:, :Wo], p3[:, :Wo], p2[:, 1:Wo + 1],       # kh = 1
        p0d[:, :Wo], p1d[:, :Wo], p0d[:, 1:Wo + 1],    # kh = 2
    )
    # im2col fusion: stack the 9 taps on the contraction axis and run ONE
    # K=9*C MXU matmul (accumulation stays inside the MXU's f32 accumulator;
    # no per-tap reshapes, no accumulator load/add/store passes).
    lhs = jnp.concatenate(taps, axis=-1).reshape(tH * Wo, 9 * C)
    acc = jnp.dot(lhs, w_ref[...], preferred_element_type=jnp.float32)
    acc = acc + b_ref[...].astype(jnp.float32)
    o_ref[0] = acc.reshape(tH, Wo, C).astype(o_ref.dtype)


def _avgpool2_kernel(x_ref, o_ref):
    """2x2 average pool, stride 2 — one (image, row-tile) block per grid step.

    x_ref: (1, 2*tH, Wo, 2*C)  NHWC rows with W folded pairwise:
                               x_ref[0, r, w, d*C + c] == img[r, 2*w + d, c]
    o_ref: (1, tH, Wo, C)
    """
    tH, Wo, C = o_ref.shape[1], o_ref.shape[2], o_ref.shape[3]
    x = x_ref[0].reshape(tH, 2, Wo, 2 * C).astype(jnp.float32)   # major split: free
    s = x[:, 0] + x[:, 1]                                        # row-pair sum
    o_ref[0] = ((s[:, :, :C] + s[:, :, C:]) * 0.25).astype(o_ref.dtype)


# ---------------------------------------------------------------------------
# Helpers
# ---------------------------------------------------------------------------
def _round_up(x, m):
    return (x + m - 1) // m * m


def _vmem_cap_bytes():
    """~80% of physical VMEM: big tiles on v5e/v6e (128 MiB), headroom on v7x."""
    try:
        cap = int(pltpu.get_tpu_info().vmem_capacity_bytes)
    except Exception:
        cap = 64 << 20                      # conservative (v7x-sized) fallback
    return max(32 << 20, int(cap * 0.8))


def _pick_row_tile(Ho, n_images, tile_bytes, target_bytes, override=None):
    """Largest divisor t of Ho with tile_bytes(t) <= target_bytes (>= 1)."""
    if override is not None:
        assert Ho % override == 0, "tile_rows must divide the output height"
        return override
    best = 1
    for t in range(1, Ho + 1):
        if Ho % t == 0 and tile_bytes(t) <= target_bytes:
            best = t
    # v7x megacore: keep >= 2 balanced parallel grid chunks when batch is 1.
    if n_images == 1 and Ho // best < 2:
        for t in range(best // 2, 0, -1):
            if Ho % t == 0:
                best = t
                break
    return best


def _const_spec(shape, index_map, single_buffer):
    # pl.Buffered(1): constant-index params need no double-buffering; halves
    # their VMEM footprint (matters most on v7x's 64 MiB VMEM).  Disabled by
    # default for portability across jax versions.
    if single_buffer:
        try:
            return pl.BlockSpec(shape, index_map, pipeline_mode=pl.Buffered(1))
        except Exception:
            pass
    return pl.BlockSpec(shape, index_map)


# ---------------------------------------------------------------------------
# Wrappers (layout plumbing, tile selection, pallas_call)
# ---------------------------------------------------------------------------
def downsample_conv(x_nchw, weight, bias, *, tile_rows=None,
                    block_target_bytes=None, compute_dtype=jnp.bfloat16,
                    single_buffer_params=False, out_layout="NCHW"):
    """Equivalent of nn.Conv2d(C, C, 3, stride=2, padding=1) on NCHW input."""
    N, C, H, W = x_nchw.shape
    # TODO(synk): odd H/W (allowed by nn.Conv2d stride-2 padding-1) not supported.
    assert H % 2 == 0 and W % 2 == 0, "even spatial dims assumed"
    Ho, Wo = H // 2, W // 2

    # Lane-align channels (unmasked vst, aligned tap concat, full MXU lanes)
    # and sublane-align the plane width.
    Cp = _round_up(C, 128)
    Wp = _round_up(Wo + 1, 8)
    ce = jnp.dtype(compute_dtype).itemsize
    osz = x_nchw.dtype.itemsize

    # --- single pre-pass: pad + space-to-depth + dtype cast (one HBM copy) ---
    pad_w = 2 * Wp - (W + 2)
    xp = jnp.pad(x_nchw, ((0, 0), (0, Cp - C), (1, 1), (1, 1 + pad_w)))
    xp = xp.reshape(N, Cp, Ho + 1, 2, Wp, 2)
    x_s2d = jnp.transpose(xp, (0, 3, 5, 2, 4, 1)).reshape(N, 4, Ho + 1, Wp, Cp)
    x_s2d = x_s2d.astype(compute_dtype)   # bf16 MXU inputs, f32 accumulation
    # TODO(synk): on v7x an fp8 (e4m3) variant of x_s2d / w9 would halve HBM
    # bytes again (v7x MXU has bf16+fp8, no int paths).

    wp_, bp_ = weight, bias
    if Cp != C:
        # TODO(synk): for C < 128 a lane-packed VPU path would avoid the pad;
        # realistic DiffusionUNet channel counts are >= 128 (pad is a no-op).
        wp_ = jnp.pad(weight, ((0, Cp - C), (0, Cp - C), (0, 0), (0, 0)))
        bp_ = jnp.pad(bias, ((0, Cp - C),))
    # (O, I, kh, kw) -> rows (kh*3+kw)*Cp + cin of the fused (9*Cp, Cp) matrix.
    w9 = jnp.transpose(wp_, (2, 3, 1, 0)).reshape(9 * Cp, Cp).astype(compute_dtype)
    b2 = bp_.reshape(1, Cp).astype(jnp.float32)

    # --- tile selection: biggest row tile that fits the per-step VMEM budget --
    cap = _vmem_cap_bytes()
    if block_target_bytes is None:
        block_target_bytes = max(4 << 20, cap // 8)   # ~13 MiB on 128 MiB chips
    fixed = (2 * (2 * Wp * Cp * ce)
             + (1 if single_buffer_params else 2) * (9 * Cp * Cp * ce + Cp * 4))

    def tile_bytes(t):                                # double-buffered I/O + scratch
        return (2 * (4 * t * Wp * Cp * ce + t * Wo * Cp * osz)
                + t * Wo * 9 * Cp * ce                # im2col stack
                + t * Wo * Cp * 4)                    # f32 matmul result

    budget = min(block_target_bytes, max(1 << 20, cap - fixed - (8 << 20)))
    tH = _pick_row_tile(Ho, N, tile_bytes, budget, tile_rows)

    out = pl.pallas_call(
        _conv3x3_s2_kernel,
        out_shape=jax.ShapeDtypeStruct((N, Ho, Wo, Cp), x_nchw.dtype),
        grid=(N, Ho // tH),
        in_specs=[
            pl.BlockSpec((1, 4, tH, Wp, Cp), lambda n, r: (n, 0, r, 0, 0)),
            # 1-row halo (planes 0/1) consumed by the kh == 2 taps.
            pl.BlockSpec((1, 2, 1, Wp, Cp),
                         lambda n, r: (n, 0, (r + 1) * tH, 0, 0)),
            # Constant index maps -> the pipeline fetches these only once.
            _const_spec((9 * Cp, Cp), lambda n, r: (0, 0), single_buffer_params),
            _const_spec((1, Cp), lambda n, r: (0, 0), single_buffer_params),
        ],
        out_specs=pl.BlockSpec((1, tH, Wo, Cp), lambda n, r: (n, r, 0, 0)),
        compiler_params=pltpu.CompilerParams(
            dimension_semantics=("parallel", "parallel"),   # megacore-friendly
            vmem_limit_bytes=cap),
    )(x_s2d, x_s2d, w9, b2)

    if Cp != C:
        out = out[..., :C]
    if out_layout == "NHWC":
        # TODO(synk): an NHWC module contract would also remove the input copy.
        return out
    return jnp.transpose(out, (0, 3, 1, 2))               # back to NCHW


def downsample_avgpool(x_nchw, *, tile_rows=None, block_target_bytes=None,
                       out_layout="NCHW"):
    """Equivalent of nn.AvgPool2d(2) (kernel=2, stride=2) on NCHW input."""
    N, C, H, W = x_nchw.shape
    # TODO(synk): odd H/W (AvgPool2d floor behaviour) not supported.
    assert H % 2 == 0 and W % 2 == 0, "even spatial dims assumed"
    Ho, Wo = H // 2, W // 2
    isz = x_nchw.dtype.itemsize

    # Single NCHW->NHWC copy; folding (W, C) -> (Wo, 2C) is a free reshape, so
    # the kernel reads every element exactly once (memory-bound path).
    # TODO(synk): with C % 128 == 0 the in-kernel half-lane split is free.
    x = jnp.transpose(x_nchw, (0, 2, 3, 1)).reshape(N, H, Wo, 2 * C)

    cap = _vmem_cap_bytes()
    if block_target_bytes is None:
        block_target_bytes = max(4 << 20, cap // 8)

    def tile_bytes(t):
        return 2 * (2 * t * Wo * 2 * C * isz + t * Wo * C * isz)

    budget = min(block_target_bytes, max(1 << 20, cap - (8 << 20)))
    tH = _pick_row_tile(Ho, N, tile_bytes, budget, tile_rows)

    out = pl.pallas_call(
        _avgpool2_kernel,
        out_shape=jax.ShapeDtypeStruct((N, Ho, Wo, C), x_nchw.dtype),
        grid=(N, Ho // tH),
        in_specs=[pl.BlockSpec((1, 2 * tH, Wo, 2 * C), lambda n, r: (n, r, 0, 0))],
        out_specs=pl.BlockSpec((1, tH, Wo, C), lambda n, r: (n, r, 0, 0)),
        compiler_params=pltpu.CompilerParams(
            dimension_semantics=("parallel", "parallel"),
            vmem_limit_bytes=cap),
    )(x)
    if out_layout == "NHWC":
        return out
    return jnp.transpose(out, (0, 3, 1, 2))               # back to NCHW


class Downsample:
    """Pallas port of models/DiffusionUNet.py::Downsample (dims=2 only)."""

    def __init__(self, channels, use_conv, dims=2, *, key=None,
                 compute_dtype=jnp.bfloat16):
        # TODO(synk): dims=1 / dims=3 variants (Conv1d/3d stride (1,2,2),
        # AvgPool1d/3d) not implemented.
        assert dims == 2, "only dims=2 implemented"
        self.channels = channels
        self.use_conv = use_conv
        self.compute_dtype = compute_dtype
        if use_conv:
            key = jax.random.PRNGKey(0) if key is None else key
            kw_, kb_ = jax.random.split(key)
            fan_in = channels * 3 * 3
            bound = 1.0 / (fan_in ** 0.5)
            # deterministic init mirroring Conv2d's uniform(-1/sqrt(fan_in), +...)
            self.weight = jax.random.uniform(kw_, (channels, channels, 3, 3),
                                             jnp.float32, -bound, bound)
            self.bias = jax.random.uniform(kb_, (channels,),
                                           jnp.float32, -bound, bound)

    def __call__(self, x):
        assert x.shape[1] == self.channels
        if self.use_conv:
            return downsample_conv(x, self.weight, self.bias,
                                   compute_dtype=self.compute_dtype)
        return downsample_avgpool(x)


# ---------------------------------------------------------------------------
# Demo / self-check
# ---------------------------------------------------------------------------
if __name__ == "__main__":
    key = jax.random.PRNGKey(0)
    kx, kp, kx2 = jax.random.split(key, 3)
    N, C, H, W = 2, 4, 16, 16
    x = jax.random.normal(kx, (N, C, H, W), jnp.float32)

    def conv_ref(inp, wgt, bia):
        r = lax.conv_general_dilated(inp, wgt, window_strides=(2, 2),
                                     padding=((1, 1), (1, 1)),
                                     dimension_numbers=("NCHW", "OIHW", "NCHW"))
        return r + bia[None, :, None, None]

    # --- conv path (use_conv=True), default bf16 MXU inputs / f32 accumulate ---
    mod_conv = Downsample(C, use_conv=True, key=kp)
    ref = conv_ref(x, mod_conv.weight, mod_conv.bias)
    y = jax.block_until_ready(mod_conv(x))
    assert y.shape == (N, C, H // 2, W // 2)
    assert jnp.allclose(y, ref, atol=5e-2, rtol=5e-2), "conv (bf16) mismatch"

    # --- conv path, f32 compute: exact check of the im2col / tiling math ---
    y32 = jax.block_until_ready(
        downsample_conv(x, mod_conv.weight, mod_conv.bias,
                        compute_dtype=jnp.float32))
    assert jnp.allclose(y32, ref, atol=1e-5, rtol=1e-5), "conv (f32) mismatch"

    # --- conv path, multiple row tiles (exercises the halo block) ---
    x2 = jax.random.normal(kx2, (1, C, 32, 32), jnp.float32)
    ref2 = conv_ref(x2, mod_conv.weight, mod_conv.bias)
    y2 = jax.block_until_ready(
        downsample_conv(x2, mod_conv.weight, mod_conv.bias,
                        compute_dtype=jnp.float32, tile_rows=4))
    assert jnp.allclose(y2, ref2, atol=1e-5, rtol=1e-5), "tiled conv mismatch"

    # --- avg-pool path (use_conv=False) ---
    mod_pool = Downsample(C, use_conv=False)
    z = jax.block_until_ready(mod_pool(x))
    z_ref = x.reshape(N, C, H // 2, 2, W // 2, 2).mean(axis=(3, 5))
    assert jnp.allclose(z, z_ref, atol=1e-5, rtol=1e-5), "avgpool mismatch"

    # --- avg-pool path, multiple row tiles ---
    z2 = jax.block_until_ready(downsample_avgpool(x2, tile_rows=4))
    z2_ref = x2.reshape(1, C, 16, 2, 16, 2).mean(axis=(3, 5))
    assert jnp.allclose(z2, z2_ref, atol=1e-5, rtol=1e-5), "tiled avgpool mismatch"

    print("KERNEL_OK")
</pallas_src>

<mosaic_0001>
module attributes {stable_mosaic.version = 11 : i64} {
  func.func @_conv3x3_s2_kernel(%arg0: i32, %arg1: i32, %arg2: memref<1x4x8x16x128xbf16, #tpu.memory_space<vmem>>, %arg3: memref<1x2x1x16x128xbf16, #tpu.memory_space<vmem>>, %arg4: memref<1152x128xbf16, #tpu.memory_space<vmem>>, %arg5: memref<1x128xf32, #tpu.memory_space<vmem>>, %arg6: memref<1x8x8x128xf32, #tpu.memory_space<vmem>>) attributes {dimension_semantics = [#tpu.dimension_semantics<parallel>, #tpu.dimension_semantics<parallel>], iteration_bounds = array<i64: 2, 1>, scalar_prefetch = 0 : i64, scratch_operands = 0 : i64, tpu.core_type = #tpu.core_type<tc>, window_params = [{transform_indices = @transform_0, window_bounds = array<i64: 1, 4, 8, 16, 128>}, {transform_indices = @transform_1, window_bounds = array<i64: 1, 2, 1, 16, 128>}, {pipeline_mode = #tpu.pipeline_mode<synchronous>, transform_indices = @transform_2, window_bounds = array<i64: 1152, 128>}, {pipeline_mode = #tpu.pipeline_mode<synchronous>, transform_indices = @transform_3, window_bounds = array<i64: 1, 128>}, {transform_indices = @transform_4, window_bounds = array<i64: 1, 8, 8, 128>}]} {
    %c0 = arith.constant 0 : index
    %c0_0 = arith.constant 0 : index
    %c0_1 = arith.constant 0 : index
    %c0_2 = arith.constant 0 : index
    %c0_3 = arith.constant 0 : index
    %0 = vector.load %arg2[%c0, %c0_0, %c0_1, %c0_2, %c0_3] : memref<1x4x8x16x128xbf16, #tpu.memory_space<vmem>>, vector<1x1x8x16x128xbf16>
    %1 = vector.shape_cast %0 : vector<1x1x8x16x128xbf16> to vector<8x16x128xbf16>
    %c0_4 = arith.constant 0 : index
    %c1 = arith.constant 1 : index
    %c0_5 = arith.constant 0 : index
    %c0_6 = arith.constant 0 : index
    %c0_7 = arith.constant 0 : index
    %2 = vector.load %arg2[%c0_4, %c1, %c0_5, %c0_6, %c0_7] : memref<1x4x8x16x128xbf16, #tpu.memory_space<vmem>>, vector<1x1x8x16x128xbf16>
    %3 = vector.shape_cast %2 : vector<1x1x8x16x128xbf16> to vector<8x16x128xbf16>
    %c0_8 = arith.constant 0 : index
    %c2 = arith.constant 2 : index
    %c0_9 = arith.constant 0 : index
    %c0_10 = arith.constant 0 : index
    %c0_11 = arith.constant 0 : index
    %4 = vector.load %arg2[%c0_8, %c2, %c0_9, %c0_10, %c0_11] : memref<1x4x8x16x128xbf16, #tpu.memory_space<vmem>>, vector<1x1x8x16x128xbf16>
    %5 = vector.shape_cast %4 : vector<1x1x8x16x128xbf16> to vector<8x16x128xbf16>
    %c0_12 = arith.constant 0 : index
    %c3 = arith.constant 3 : index
    %c0_13 = arith.constant 0 : index
    %c0_14 = arith.constant 0 : index
    %c0_15 = arith.constant 0 : index
    %6 = vector.load %arg2[%c0_12, %c3, %c0_13, %c0_14, %c0_15] : memref<1x4x8x16x128xbf16, #tpu.memory_space<vmem>>, vector<1x1x8x16x128xbf16>
    %7 = vector.shape_cast %6 : vector<1x1x8x16x128xbf16> to vector<8x16x128xbf16>
    %8 = vector.extract_strided_slice %1 {offsets = [1, 0, 0], sizes = [7, 16, 128], strides = [1, 1, 1]} : vector<8x16x128xbf16> to vector<7x16x128xbf16>
    %c0_16 = arith.constant 0 : index
    %c0_17 = arith.constant 0 : index
    %c0_18 = arith.constant 0 : index
    %c0_19 = arith.constant 0 : index
    %c0_20 = arith.constant 0 : index
    %9 = vector.load %arg3[%c0_16, %c0_17, %c0_18, %c0_19, %c0_20] : memref<1x2x1x16x128xbf16, #tpu.memory_space<vmem>>, vector<1x1x1x16x128xbf16>
    %10 = vector.shape_cast %9 : vector<1x1x1x16x128xbf16> to vector<1x16x128xbf16>
    %11 = tpu.concatenate %8, %10 in 0 : vector<7x16x128xbf16>, vector<1x16x128xbf16> -> vector<8x16x128xbf16>
    %12 = vector.extract_strided_slice %3 {offsets = [1, 0, 0], sizes = [7, 16, 128], strides = [1, 1, 1]} : vector<8x16x128xbf16> to vector<7x16x128xbf16>
    %c0_21 = arith.constant 0 : index
    %c1_22 = arith.constant 1 : index
    %c0_23 = arith.constant 0 : index
    %c0_24 = arith.constant 0 : index
    %c0_25 = arith.constant 0 : index
    %13 = vector.load %arg3[%c0_21, %c1_22, %c0_23, %c0_24, %c0_25] : memref<1x2x1x16x128xbf16, #tpu.memory_space<vmem>>, vector<1x1x1x16x128xbf16>
    %14 = vector.shape_cast %13 : vector<1x1x1x16x128xbf16> to vector<1x16x128xbf16>
    %15 = tpu.concatenate %12, %14 in 0 : vector<7x16x128xbf16>, vector<1x16x128xbf16> -> vector<8x16x128xbf16>
    %16 = vector.extract_strided_slice %1 {offsets = [0, 0, 0], sizes = [8, 8, 128], strides = [1, 1, 1]} : vector<8x16x128xbf16> to vector<8x8x128xbf16>
    %17 = vector.extract_strided_slice %3 {offsets = [0, 0, 0], sizes = [8, 8, 128], strides = [1, 1, 1]} : vector<8x16x128xbf16> to vector<8x8x128xbf16>
    %18 = vector.extract_strided_slice %1 {offsets = [0, 1, 0], sizes = [8, 8, 128], strides = [1, 1, 1]} : vector<8x16x128xbf16> to vector<8x8x128xbf16>
    %19 = vector.extract_strided_slice %5 {offsets = [0, 0, 0], sizes = [8, 8, 128], strides = [1, 1, 1]} : vector<8x16x128xbf16> to vector<8x8x128xbf16>
    %20 = vector.extract_strided_slice %7 {offsets = [0, 0, 0], sizes = [8, 8, 128], strides = [1, 1, 1]} : vector<8x16x128xbf16> to vector<8x8x128xbf16>
    %21 = vector.extract_strided_slice %5 {offsets = [0, 1, 0], sizes = [8, 8, 128], strides = [1, 1, 1]} : vector<8x16x128xbf16> to vector<8x8x128xbf16>
    %22 = vector.extract_strided_slice %11 {offsets = [0, 0, 0], sizes = [8, 8, 128], strides = [1, 1, 1]} : vector<8x16x128xbf16> to vector<8x8x128xbf16>
    %23 = vector.extract_strided_slice %15 {offsets = [0, 0, 0], sizes = [8, 8, 128], strides = [1, 1, 1]} : vector<8x16x128xbf16> to vector<8x8x128xbf16>
    %24 = vector.extract_strided_slice %11 {offsets = [0, 1, 0], sizes = [8, 8, 128], strides = [1, 1, 1]} : vector<8x16x128xbf16> to vector<8x8x128xbf16>
    %25 = tpu.concatenate %16, %17, %18, %19, %20, %21, %22, %23, %24 in 2 : vector<8x8x128xbf16>, vector<8x8x128xbf16>, vector<8x8x128xbf16>, vector<8x8x128xbf16>, vector<8x8x128xbf16>, vector<8x8x128xbf16>, vector<8x8x128xbf16>, vector<8x8x128xbf16>, vector<8x8x128xbf16> -> vector<8x8x1152xbf16>
    %26 = vector.shape_cast %25 : vector<8x8x1152xbf16> to vector<64x1152xbf16>
    %c0_26 = arith.constant 0 : index
    %c0_27 = arith.constant 0 : index
    %27 = vector.load %arg4[%c0_26, %c0_27] : memref<1152x128xbf16, #tpu.memory_space<vmem>>, vector<1152x128xbf16>
    %cst = arith.constant dense<0.000000e+00> : vector<64x128xf32>
    %28 = tpu.matmul %26, %27, %cst {dimension_numbers = #tpu.dot_dimension_numbers<[1], [0], [0], [1], [0, 0, 1, 1], [], []>} : vector<64x1152xbf16>, vector<1152x128xbf16>, vector<64x128xf32> -> vector<64x128xf32>
    %c0_28 = arith.constant 0 : index
    %c0_29 = arith.constant 0 : index
    %29 = vector.load %arg5[%c0_28, %c0_29] : memref<1x128xf32, #tpu.memory_space<vmem>>, vector<1x128xf32>
    %30 = vector.broadcast %29 : vector<1x128xf32> to vector<64x128xf32>
    %31 = arith.addf %28, %30 : vector<64x128xf32>
    %32 = vector.shape_cast %31 : vector<64x128xf32> to vector<8x8x128xf32>
    %c0_30 = arith.constant 0 : index
    %c0_31 = arith.constant 0 : index
    %c0_32 = arith.constant 0 : index
    %c0_33 = arith.constant 0 : index
    %33 = vector.load %arg6[%c0_30, %c0_31, %c0_32, %c0_33] : memref<1x8x8x128xf32, #tpu.memory_space<vmem>>, vector<1x8x8x128xf32>
    %34 = vector.shape_cast %33 : vector<1x8x8x128xf32> to vector<8x8x128xf32>
    %35 = vector.shape_cast %32 : vector<8x8x128xf32> to vector<1x8x8x128xf32>
    tpu.vector_store %arg6[%c0_30, %c0_31, %c0_32, %c0_33], %35 {strides = array<i32>} : memref<1x8x8x128xf32, #tpu.memory_space<vmem>>, vector<1x8x8x128xf32>,
    return
  }
  func.func @transform_0(%arg0: i32, %arg1: i32) -> (i32, i32, i32, i32, i32) {
    %c0_i32 = arith.constant 0 : i32
    %c0_i32_0 = arith.constant 0 : i32
    %c0_i32_1 = arith.constant 0 : i32
    %c0_i32_2 = arith.constant 0 : i32
    return %arg0, %c0_i32, %arg1, %c0_i32_0, %c0_i32_1 : i32, i32, i32, i32, i32
  }
  func.func @transform_1(%arg0: i32, %arg1: i32) -> (i32, i32, i32, i32, i32) {
    %c1_i32 = arith.constant 1 : i32
    %0 = arith.addi %arg1, %c1_i32 : i32
    %c8_i32 = arith.constant 8 : i32
    %1 = arith.muli %0, %c8_i32 : i32
    %c0_i32 = arith.constant 0 : i32
    %c0_i32_0 = arith.constant 0 : i32
    %c0_i32_1 = arith.constant 0 : i32
    %c0_i32_2 = arith.constant 0 : i32
    return %arg0, %c0_i32, %1, %c0_i32_0, %c0_i32_1 : i32, i32, i32, i32, i32
  }
  func.func @transform_2(%arg0: i32, %arg1: i32) -> (i32, i32) {
    %c0_i32 = arith.constant 0 : i32
    %c0_i32_0 = arith.constant 0 : i32
    %c0_i32_1 = arith.constant 0 : i32
    return %c0_i32, %c0_i32_0 : i32, i32
  }
  func.func @transform_3(%arg0: i32, %arg1: i32) -> (i32, i32) {
    %c0_i32 = arith.constant 0 : i32
    %c0_i32_0 = arith.constant 0 : i32
    %c0_i32_1 = arith.constant 0 : i32
    return %c0_i32, %c0_i32_0 : i32, i32
  }
  func.func @transform_4(%arg0: i32, %arg1: i32) -> (i32, i32, i32, i32) {
    %c0_i32 = arith.constant 0 : i32
    %c0_i32_0 = arith.constant 0 : i32
    %c0_i32_1 = arith.constant 0 : i32
    return %arg0, %arg1, %c0_i32, %c0_i32_0 : i32, i32, i32, i32
  }
}

</mosaic_0001>

<llo_original>
// kernel: tpu_custom_call.1
$region0: #{tpu_custom_call.1}
  #allocation0 [shape = 'u32[]', space=smem, size = 0x4, offset = 0x4, fixed_abs, tag = 'smem constant byte address 0x4 - core index']
  #allocation1 [shape = 'u32[72,128]{1,0:T(1,128)}', space=vmem, size = 0x9000, scoped, tag = 'internal scratch']
  #allocation9 [shape = 's32[]', space=sflag, size = 0x4, offset = 0, fixed_abs, tag = 'sflag constant byte address 0x0 - dummy sync flag']
  #allocation11 [shape = 's32[]', space=sflag, size = 0x4, offset = 0, fixed_abs, tag = 'sflag constant byte address 0x0 - dummy sync flag']
  %s0 = inlined_call_operand.hbm [shape: bf16[2,4,9,16,128], index: 0, kind: input, shape index: {}]
  %s1 = inlined_call_operand.hbm [shape: bf16[2,4,9,16,128], index: 1, kind: input, shape index: {}]
  %s2 = inlined_call_operand.hbm [shape: bf16[1152,128], index: 2, kind: input, shape index: {}]
  %s3 = inlined_call_operand.vmem [shape: f32[1,128], index: 3, kind: input, shape index: {}]
  %s4 = inlined_call_operand.hbm [shape: f32[2,8,8,128], index: 4, kind: output, shape index: {}]
  %s5 = sld [smem:[#allocation0]]
  $region61: #{tpu_custom_call.1} parent=0
    _
  %s7 = ssub.s32 1, %s5
  %s8 = scalar_select 0, %s7, %s5
  $region1: #{tpu_custom_call.1} parent=0
    #allocation2 [shape = 'u8[262144]{0}', space=vmem, size = 0x40000, scoped, tag = 'input window, operand 0']
    #allocation3 [shape = 's32[2]{0}', space=sflag, size = 0x8, scoped, tag = 'scoped memory for tpu_custom_call.1']
    #allocation4 [shape = 's32[2]{0}', space=sflag, size = 0x8, scoped, tag = 'scoped memory for tpu_custom_call.1']
    #allocation5 [shape = 'u8[16384]{0}', space=vmem, size = 0x4000, scoped, tag = 'input window, operand 1']
    #allocation6 [shape = 's32[2]{0}', space=sflag, size = 0x8, scoped, tag = 'scoped memory for tpu_custom_call.1']
    #allocation7 [shape = 'u8[294912]{0}', space=vmem, size = 0x48000, scoped, tag = 'input window, operand 2, single buffered']
    #allocation8 [shape = 'u8[65536]{0}', space=vmem, size = 0x10000, scoped, tag = 'output window, operand 0']
    %9 = vsyncpa [#allocation3], 0
    %s10 = scalar_lea.sflag [#allocation3], 1
    %11 = vsyncpa %s10, 0
    %12 = vsyncpa [#allocation6], 0
    %s13 = scalar_lea.sflag [#allocation6], 1
    %14 = vsyncpa %s13, 0
    %15 = vsyncpa [#allocation4], 0
    %s16 = scalar_lea.sflag [#allocation4], 1
    %17 = vsyncpa %s16, 0
    loop: start=0, step=1, limit=4
    $region2: #{tpu_custom_call.1} parent=1 // loop_pre_header
      _
    $region3: #{tpu_custom_call.1} parent=1 // loop_header
      %s19 = sphi 0, %s23
      %p20 = scmp.ge.s32.totalorder %s19, 4
      %s26 = sphi 0, %s38
      %s27 = sphi 0, %s34
      %s28 = sphi 0, %s26
      %s29 = sphi 0, %s27
      %s30 = sphi 0, %s28
      %s31 = sphi 0, %s29
      %s43 = sphi 0, %s45
      %s46 = sphi 0, %s43
      %s47 = sphi 0, %s46
      %s63 = sphi 0, %s47
      %s75 = sphi 0, %s77
      %s78 = sphi 0, %s75
      %s79 = sphi 0, %s78
      %s95 = sphi 0, %s79
      %s99 = sphi 0, %s99
      %s101 = sphi 0, %s99
      %s102 = sphi 0, %s101
      %s116 = sphi 0, %s102
      %s120 = sphi 0, %s120
      %s122 = sphi 0, %s120
      %s123 = sphi 0, %s122
      %s137 = sphi 0, %s123
      %s145 = sphi 0, %s147
      %s148 = sphi 0, %s145
      %s149 = sphi 0, %s148
      %s165 = sphi 0, %s149
    $region4: #{tpu_custom_call.1} parent=1 // loop_header_branch
      %22 = sbr.rel (%p20) target = $region8
    $region5: #{tpu_custom_call.1} parent=1 // loop_body
      %s24 = ssub.s32 %s19, 1
      %s25 = ssub.s32 %s19, 2
      %s32 = sadd.s32 1, %s27
      %p33 = scmp.ge.s32.totalorder %s32, 1
      %s34 = scalar_select %p33, 0, %s32
      %s35 = sadd.s32 1, %s26
      %s36 = scalar_select %p33, %s35, %s26
      %p37 = scmp.ge.s32.totalorder %s36, 2
      %s38 = scalar_select %p37, 0, %s36
      %s39 = ssub.s32 %s26, %s38
      %s40 = ssub.s32 %s27, %s34
      %s41 = sor.u32 %s39, %s40
      %p42 = scmp.eq.s32.totalorder %s41, 0
      %s44 = sadd.s32 %s43, 1
      %s45 = scalar_select %p42, %s43, %s44
      %p48 = pneg %p42
      %p49 = scmp.eq.s32.totalorder %s19, 1
      %p50 = por %p48, %p49
      %p51 = scmp.ne.s32.totalorder %s43, %s46
      %p52 = scmp.eq.s32.totalorder %s19, 0
      %p53 = por %p51, %p52
      %p54 = scmp.ne.s32.totalorder %s43, %s46
      %p55 = scmp.eq.s32.totalorder %s24, 1
      %p56 = por %p54, %p55
      %p57 = scmp.ne.s32.totalorder %s46, %s47
      %p58 = scmp.eq.s32.totalorder %s24, 0
      %p59 = por %p57, %p58
      %p60 = scmp.ne.s32.totalorder %s46, %s47
      %p61 = scmp.eq.s32.totalorder %s25, 1
      %p62 = por %p60, %p61
      %p64 = scmp.ne.s32.totalorder %s47, %s63
      %p65 = scmp.eq.s32.totalorder %s25, 0
      %p66 = por %p64, %p65
      %s67 = sadd.s32 %s27, 1
      %s68 = smul.u32 %s67, 8
      %s69 = sadd.s32 %s34, 1
      %s70 = smul.u32 %s69, 8
      %s71 = ssub.s32 %s26, %s38
      %s72 = ssub.s32 %s68, %s70
      %s73 = sor.u32 %s71, %s72
      %p74 = scmp.eq.s32.totalorder %s73, 0
      %s76 = sadd.s32 %s75, 1
      %s77 = scalar_select %p74, %s75, %s76
      %p80 = pneg %p74
      %p81 = scmp.eq.s32.totalorder %s19, 1
      %p82 = por %p80, %p81
      %p83 = scmp.ne.s32.totalorder %s75, %s78
      %p84 = scmp.eq.s32.totalorder %s19, 0
      %p85 = por %p83, %p84
      %p86 = scmp.ne.s32.totalorder %s75, %s78
      %p87 = scmp.eq.s32.totalorder %s24, 1
      %p88 = por %p86, %p87
      %p89 = scmp.ne.s32.totalorder %s78, %s79
      %p90 = scmp.eq.s32.totalorder %s24, 0
      %p91 = por %p89, %p90
      %p92 = scmp.ne.s32.totalorder %s78, %s79
      %p93 = scmp.eq.s32.totalorder %s25, 1
      %p94 = por %p92, %p93
      %p96 = scmp.ne.s32.totalorder %s79, %s95
      %p97 = scmp.eq.s32.totalorder %s25, 0
      %p98 = por %p96, %p97
      %s100 = sadd.s32 %s99, 1
      %p103 = scmp.eq.s32.totalorder %s19, 1
      %p104 = scmp.ne.s32.totalorder %s99, %s101
      %p105 = scmp.eq.s32.totalorder %s19, 0
      %p106 = por %p104, %p105
      %p107 = scmp.ne.s32.totalorder %s99, %s101
      %p108 = scmp.eq.s32.totalorder %s24, 1
      %p109 = por %p107, %p108
      %p110 = scmp.ne.s32.totalorder %s101, %s102
      %p111 = scmp.eq.s32.totalorder %s24, 0
      %p112 = por %p110, %p111
      %p113 = scmp.ne.s32.totalorder %s101, %s102
      %p114 = scmp.eq.s32.totalorder %s25, 1
      %p115 = por %p113, %p114
      %p117 = scmp.ne.s32.totalorder %s102, %s116
      %p118 = scmp.eq.s32.totalorder %s25, 0
      %p119 = por %p117, %p118
      %s121 = sadd.s32 %s120, 1
      %p124 = scmp.eq.s32.totalorder %s19, 1
      %p125 = scmp.ne.s32.totalorder %s120, %s122
      %p126 = scmp.eq.s32.totalorder %s19, 0
      %p127 = por %p125, %p126
      %p128 = scmp.ne.s32.totalorder %s120, %s122
      %p129 = scmp.eq.s32.totalorder %s24, 1
      %p130 = por %p128, %p129
      %p131 = scmp.ne.s32.totalorder %s122, %s123
      %p132 = scmp.eq.s32.totalorder %s24, 0
      %p133 = por %p131, %p132
      %p134 = scmp.ne.s32.totalorder %s122, %s123
      %p135 = scmp.eq.s32.totalorder %s25, 1
      %p136 = por %p134, %p135
      %p138 = scmp.ne.s32.totalorder %s123, %s137
      %p139 = scmp.eq.s32.totalorder %s25, 0
      %p140 = por %p138, %p139
      %s141 = ssub.s32 %s26, %s38
      %s142 = ssub.s32 %s27, %s34
      %s143 = sor.u32 %s141, %s142
      %p144 = scmp.eq.s32.totalorder %s143, 0
      %s146 = sadd.s32 %s145, 1
      %s147 = scalar_select %p144, %s145, %s146
      %p150 = pneg %p144
      %p151 = scmp.eq.s32.totalorder %s19, 1
      %p152 = por %p150, %p151
      %p153 = scmp.ne.s32.totalorder %s145, %s148
      %p154 = scmp.eq.s32.totalorder %s19, 0
      %p155 = por %p153, %p154
      %p156 = scmp.ne.s32.totalorder %s145, %s148
      %p157 = scmp.eq.s32.totalorder %s24, 1
      %p158 = por %p156, %p157
      %p159 = scmp.ne.s32.totalorder %s148, %s149
      %p160 = scmp.eq.s32.totalorder %s24, 0
      %p161 = por %p159, %p160
      %p162 = scmp.ne.s32.totalorder %s148, %s149
      %p163 = scmp.eq.s32.totalorder %s25, 1
      %p164 = por %p162, %p163
      %p166 = scmp.ne.s32.totalorder %s149, %s165
      %p167 = scmp.eq.s32.totalorder %s25, 0
      %p168 = por %p166, %p167
      %p169 = scmp.le.s32.totalorder 1, %s19
      %p170 = scmp.lt.s32.totalorder %s19, 3
      %p171 = pnand %p169, %p170
      %p172 = pneg %p171
      // Predicated region
      $region9: #{tpu_custom_call.1} parent=5 // pred_check
        _
      $region10: #{tpu_custom_call.1} parent=5 // pred_check_branch
        %174 = sbr.rel (%p171) target = $region12
      $region11: #{tpu_custom_call.1} parent=5 // pred_region
        %s175 = ssub.s32 %s19, 1
        // Predicated region
        $region13: #{tpu_custom_call.1} parent=11 // pred_check
          %p176 = pneg %p112
        $region14: #{tpu_custom_call.1} parent=11 // pred_check_branch
          %178 = sbr.rel (%p176) target = $region16
        $region15: #{tpu_custom_call.1} parent=11 // pred_region
          %180 = vsyncadd [#allocation6], 0
          %s181 = sshll.u32 %s2, 4
          %s182 = int_to_ptr.hbm [resolvable:$true] %s181
          %s183 = sshll.u32 [#allocation7], 4
          %s184 = int_to_ptr.vmem [resolvable:$true] %s183
          %189 = dma.hbm_to_vmem [thread:$0]  %s182, 9216, %s184, [#allocation6], 64, 64, 4
        $region16: #{tpu_custom_call.1} parent=11 // pred_fallthru
          _
        // Predicated region
        $region17: #{tpu_custom_call.1} parent=11 // pred_check
          %p190 = pneg %p133
        $region18: #{tpu_custom_call.1} parent=11 // pred_check_branch
          %192 = sbr.rel (%p190) target = $region20
        $region19: #{tpu_custom_call.1} parent=11 // pred_region
          _
        $region20: #{tpu_custom_call.1} parent=11 // pred_fallthru
          _
      $region12: #{tpu_custom_call.1} parent=5 // pred_fallthru
        _
      %p193 = scmp.lt.s32.totalorder %s19, 2
      // Predicated region
      $region21: #{tpu_custom_call.1} parent=5 // pred_check
        %p194 = pneg %p193
      $region22: #{tpu_custom_call.1} parent=5 // pred_check_branch
        %196 = sbr.rel (%p194) target = $region24
      $region23: #{tpu_custom_call.1} parent=5 // pred_region
        // Predicated region
        $region25: #{tpu_custom_call.1} parent=23 // pred_check
          %p197 = pneg %p53
        $region26: #{tpu_custom_call.1} parent=23 // pred_check_branch
          %199 = sbr.rel (%p197) target = $region28
        $region27: #{tpu_custom_call.1} parent=23 // pred_region
          #allocation10 [shape = 'u32[6]{0}', space=smem, size = 0x18, scoped, tag = 'DMA stride descriptor']
          %s200 = sand.u32 %s43, 1
          %s201 = scalar_lea.sflag [#allocation3], %s200
          %s202 = sand.u32 %s43, 1
          %s203 = smul.addr %s202, 256
          %s204 = scalar_lea.vmem [#allocation2], %s203
          %s205 = smul.u32 8, %s27
          %s206 = ssub.s32 9, %s205
          %p207 = scmp.lt.s32.totalorder %s206, 8
          %s208 = scalar_select %p207, %s206, 8
          %s209 = smul.u32 16, %s208
          %s210 = smul.u32 %s209, 2
          %s211 = ssub.s32 256, %s210
          %s212 = sshll.u32 %s211, 4
          %213 = vsyncadd %s201, %s212
          %p214 = scmp.ne.s32.totalorder 0, %s210
          %s215 = smul.addr %s205, 2
          %s216 = smul.addr %s26, 72
          %s217 = sadd.s32 %s215, %s216
          %s218 = smul.addr %s217, 4
          %s219 = scalar_lea.hbm %s0, %s218
          %s220 = smul.u32 %s208, 2
          %s221 = smul.u32 4, %s220
          %s222 = smul.u32 %s221, 4
          %s224 = sshll.u32 1, 14
          %s225 = sxor.u32 4294967295, %s224
          %s227 = sld [smem:[#allocation0]]
          %s228 = sadd.s32 2, %s227
          %s230 = sshll.u32 7, 26
          %s231 = sxor.u32 4294967295, %s230
          %s232 = sand.u32 0, %s231
          %s233 = sshll.u32 %s228, 26
          %s234 = sor.u32 %s232, %s233
          %s235 = sshll.u32 %s219, 4
          %s236 = int_to_ptr.hbm [resolvable:$true] %s235
          %s237 = sshll.u32 %s204, 4
          %s238 = int_to_ptr.vmem [resolvable:$true] %s237
          %s239 = sshll.u32 %s222, 4
          %244 = sst [smem:[#allocation10]] 1152
          %s245 = scalar_lea.smem [#allocation10], 1
          %246 = sst [smem:[%s245]] 1024
          %s247 = scalar_lea.smem [#allocation10], 2
          %248 = sst [smem:[%s247]] %s220
          %s249 = scalar_lea.smem [#allocation10], 3
          %250 = sst [smem:[%s249]] 64
          %s251 = scalar_lea.smem [#allocation10], 4
          %252 = sst [smem:[%s251]] 64
          %s253 = scalar_lea.smem [#allocation10], 5
          %254 = sst [smem:[%s253]] 4
          %256 = dma.general (%p214), %s236, %s239, %s238, %s201, [#allocation9], [#allocation10], %s234, 0
        $region28: #{tpu_custom_call.1} parent=23 // pred_fallthru
          _
        // Predicated region
        $region29: #{tpu_custom_call.1} parent=23 // pred_check
          %p257 = pneg %p85
        $region30: #{tpu_custom_call.1} parent=23 // pred_check_branch
          %259 = sbr.rel (%p257) target = $region32
        $region31: #{tpu_custom_call.1} parent=23 // pred_region
          #allocation12 [shape = 'u32[6]{0}', space=smem, size = 0x18, scoped, tag = 'DMA stride descriptor']
          %s260 = sand.u32 %s19, 1
          %s261 = scalar_lea.sflag [#allocation6], %s260
          %s262 = sand.u32 %s75, 1
          %s263 = smul.addr %s262, 16
          %s264 = scalar_lea.vmem [#allocation5], %s263
          %s265 = sadd.s32 %s27, 1
          %s266 = smul.u32 %s265, 8
          %268 = vsyncadd %s261, 0
          %s269 = smul.addr %s266, 2
          %s270 = smul.addr %s26, 72
          %s271 = sadd.s32 %s269, %s270
          %s272 = smul.addr %s271, 4
          %s273 = scalar_lea.hbm %s1, %s272
          %s275 = sshll.u32 1, 14
          %s276 = sxor.u32 4294967295, %s275
          %s278 = sld [smem:[#allocation0]]
          %s279 = sadd.s32 2, %s278
          %s281 = sshll.u32 7, 26
          %s282 = sxor.u32 4294967295, %s281
          %s283 = sand.u32 0, %s282
          %s284 = sshll.u32 %s279, 26
          %s285 = sor.u32 %s283, %s284
          %s286 = sshll.u32 %s273, 4
          %s287 = int_to_ptr.hbm [resolvable:$true] %s286
          %s288 = sshll.u32 %s264, 4
          %s289 = int_to_ptr.vmem [resolvable:$true] %s288
          %295 = sst [smem:[#allocation12]] 1152
          %s296 = scalar_lea.smem [#allocation12], 1
          %297 = sst [smem:[%s296]] 128
          %s298 = scalar_lea.smem [#allocation12], 2
          %299 = sst [smem:[%s298]] 2
          %s300 = scalar_lea.smem [#allocation12], 3
          %301 = sst [smem:[%s300]] 64
          %s302 = scalar_lea.smem [#allocation12], 4
          %303 = sst [smem:[%s302]] 64
          %s304 = scalar_lea.smem [#allocation12], 5
          %305 = sst [smem:[%s304]] 4
          %307 = dma.general %s287, 256, %s289, %s261, [#allocation11], [#allocation12], %s285, 0
        $region32: #{tpu_custom_call.1} parent=23 // pred_fallthru
          _
      $region24: #{tpu_custom_call.1} parent=5 // pred_fallthru
        _
      %p308 = scmp.le.s32.totalorder 1, %s19
      %p309 = scmp.lt.s32.totalorder %s19, 3
      %p310 = pnand %p308, %p309
      %p311 = pneg %p310
      // Predicated region
      $region33: #{tpu_custom_call.1} parent=5 // pred_check
        _
      $region34: #{tpu_custom_call.1} parent=5 // pred_check_branch
        %313 = sbr.rel (%p310) target = $region36
      $region35: #{tpu_custom_call.1} parent=5 // pred_region
        %s314 = ssub.s32 %s19, 1
        %s315 = sand.u32 %s46, 1
        %s316 = scalar_lea.sflag [#allocation3], %s315
        %s317 = sand.u32 %s46, 1
        %s318 = smul.addr %s317, 256
        %s319 = scalar_lea.vmem [#allocation2], %s318
        // Predicated region
        $region37: #{tpu_custom_call.1} parent=35 // pred_check
          %p320 = pneg %p59
        $region38: #{tpu_custom_call.1} parent=35 // pred_check_branch
          %322 = sbr.rel (%p320) target = $region40
        $region39: #{tpu_custom_call.1} parent=35 // pred_region
          %324 = dma.done %s316, 4096
        $region40: #{tpu_custom_call.1} parent=35 // pred_fallthru
          _
        %s325 = sand.u32 %s24, 1
        %s326 = scalar_lea.sflag [#allocation6], %s325
        %s327 = sand.u32 %s78, 1
        %s328 = smul.addr %s327, 16
        %s329 = scalar_lea.vmem [#allocation5], %s328
        // Predicated region
        $region41: #{tpu_custom_call.1} parent=35 // pred_check
          %p330 = pneg %p91
        $region42: #{tpu_custom_call.1} parent=35 // pred_check_branch
          %332 = sbr.rel (%p330) target = $region44
        $region43: #{tpu_custom_call.1} parent=35 // pred_region
          %334 = dma.done %s326, 256
        $region44: #{tpu_custom_call.1} parent=35 // pred_fallthru
          _
        // Predicated region
        $region45: #{tpu_custom_call.1} parent=35 // pred_check
          %p335 = pneg %p112
        $region46: #{tpu_custom_call.1} parent=35 // pred_check_branch
          %337 = sbr.rel (%p335) target = $region48
        $region47: #{tpu_custom_call.1} parent=35 // pred_region
          %339 = dma.done [#allocation6], 9216
        $region48: #{tpu_custom_call.1} parent=35 // pred_fallthru
          _
        %s340 = sand.u32 %s46, 1
        %s341 = scalar_lea.sflag [#allocation3], %s340
        %s342 = sand.u32 %s46, 1
        %s343 = smul.addr %s342, 256
        %s344 = scalar_lea.vmem [#allocation2], %s343
        %p345 = pneg %p59
        %p346 = pneg %p56
        %s347 = sand.u32 %s24, 1
        %s348 = scalar_lea.sflag [#allocation6], %s347
        %s349 = sand.u32 %s78, 1
        %s350 = smul.addr %s349, 16
        %s351 = scalar_lea.vmem [#allocation5], %s350
        %p352 = pneg %p91
        %p353 = pneg %p88
        %p354 = pneg %p112
        %p355 = pneg %p109
        %p356 = pneg %p133
        %p357 = pneg %p130
        %p358 = pneg %p161
        %p359 = pneg %p158
        %s360 = sand.u32 %s148, 1
        %s361 = scalar_lea.sflag [#allocation4], %s360
        %s362 = sand.u32 %s148, 1
        %s363 = smul.addr %s362, 64
        %s364 = scalar_lea.vmem [#allocation8], %s363
        %s365 = smul.u32 8, %s29
        %s366 = ssub.s32 9, %s365
        %p367 = scmp.lt.s32.totalorder %s366, 8
        %s368 = scalar_select %p367, %s366, 8
        %s369 = smul.u32 16, %s368
        %s370 = smul.u32 %s369, 2
        %s371 = sadd.s32 %s29, 1
        %s372 = smul.u32 %s371, 8
        %s373 = smul.u32 8, %s29
        %v374 = vld [vmem:[%s319] sm:$0xf]
        %v375 = vld [vmem:[%s319 + $0x4] sm:$0xf]
        %v376 = vld [vmem:[%s319 + $0x8] sm:$0xf]
        %v377 = vld [vmem:[%s319 + $0xc] sm:$0xf]
        %v378 = vld [vmem:[%s319 + $0x10] sm:$0xf]
        %v379 = vld [vmem:[%s319 + $0x14] sm:$0xf]
        %v380 = vld [vmem:[%s319 + $0x18] sm:$0xf]
        %v381 = vld [vmem:[%s319 + $0x1c] sm:$0xf]
        %v382 = vld [vmem:[%s319 + $0x20] sm:$0xf]
        %v383 = vld [vmem:[%s319 + $0x24] sm:$0xf]
        %v384 = vld [vmem:[%s319 + $0x28] sm:$0xf]
        %v385 = vld [vmem:[%s319 + $0x2c] sm:$0xf]
        %v386 = vld [vmem:[%s319 + $0x30] sm:$0xf]
        %v387 = vld [vmem:[%s319 + $0x34] sm:$0xf]
        %v388 = vld [vmem:[%s319 + $0x38] sm:$0xf]
        %v389 = vld [vmem:[%s319 + $0x3c] sm:$0xf]
        %s390 = scalar_lea.vmem %s319, 64 [#allocation2]
        %v391 = vld [vmem:[%s390] sm:$0xf]
        %v392 = vld [vmem:[%s390 + $0x8] sm:$0xf]
        %v393 = vld [vmem:[%s390 + $0x10] sm:$0xf]
        %v394 = vld [vmem:[%s390 + $0x18] sm:$0xf]
        %v395 = vld [vmem:[%s390 + $0x20] sm:$0xf]
        %v396 = vld [vmem:[%s390 + $0x28] sm:$0xf]
        %v397 = vld [vmem:[%s390 + $0x30] sm:$0xf]
        %v398 = vld [vmem:[%s390 + $0x38] sm:$0xf]
        %s399 = scalar_lea.vmem %s319, 128 [#allocation2]
        %v400 = vld [vmem:[%s399] sm:$0xf]
        %v401 = vld [vmem:[%s399 + $0x4] sm:$0xf]
        %v402 = vld [vmem:[%s399 + $0x8] sm:$0xf]
        %v403 = vld [vmem:[%s399 + $0xc] sm:$0xf]
        %v404 = vld [vmem:[%s399 + $0x10] sm:$0xf]
        %v405 = vld [vmem:[%s399 + $0x14] sm:$0xf]
        %v406 = vld [vmem:[%s399 + $0x18] sm:$0xf]
        %v407 = vld [vmem:[%s399 + $0x1c] sm:$0xf]
        %v408 = vld [vmem:[%s399 + $0x20] sm:$0xf]
        %v409 = vld [vmem:[%s399 + $0x24] sm:$0xf]
        %v410 = vld [vmem:[%s399 + $0x28] sm:$0xf]
        %v411 = vld [vmem:[%s399 + $0x2c] sm:$0xf]
        %v412 = vld [vmem:[%s399 + $0x30] sm:$0xf]
        %v413 = vld [vmem:[%s399 + $0x34] sm:$0xf]
        %v414 = vld [vmem:[%s399 + $0x38] sm:$0xf]
        %v415 = vld [vmem:[%s399 + $0x3c] sm:$0xf]
        %s416 = scalar_lea.vmem %s319, 192 [#allocation2]
        %v417 = vld [vmem:[%s416] sm:$0xf]
        %v418 = vld [vmem:[%s416 + $0x8] sm:$0xf]
        %v419 = vld [vmem:[%s416 + $0x10] sm:$0xf]
        %v420 = vld [vmem:[%s416 + $0x18] sm:$0xf]
        %v421 = vld [vmem:[%s416 + $0x20] sm:$0xf]
        %v422 = vld [vmem:[%s416 + $0x28] sm:$0xf]
        %v423 = vld [vmem:[%s416 + $0x30] sm:$0xf]
        %v424 = vld [vmem:[%s416 + $0x38] sm:$0xf]
        %v425 = vld [vmem:[%s329] sm:$0xf]
        %v426 = vld [vmem:[%s329 + $0x4] sm:$0xf]
        %s427 = scalar_lea.vmem %s329, 8 [#allocation5]
        %v428 = vld [vmem:[%s427] sm:$0xf]
        %v445 = vunpack.c.l.b16 %v374
        %v446 = vunpack.c.l.b16 %v375
        %v447 = vunpack.c.l.b16 %v376
        %v448 = vunpack.c.l.b16 %v377
        %v449 = vunpack.c.l.b16 %v378
        %v450 = vunpack.c.l.b16 %v379
        %v451 = vunpack.c.l.b16 %v380
        %v452 = vunpack.c.l.b16 %v381
        %v453 = vunpack.c.l.b16 %v382
        %v454 = vunpack.c.l.b16 %v383
        %v455 = vunpack.c.l.b16 %v384
        %v456 = vunpack.c.l.b16 %v385
        %v457 = vunpack.c.l.b16 %v386
        %v458 = vunpack.c.l.b16 %v387
        %v459 = vunpack.c.l.b16 %v388
        %v460 = vunpack.c.l.b16 %v389
        %v461 = vpack.c.b16 %v446, %v445
        %v462 = vpack.c.b16 %v448, %v447
        %v463 = vpack.c.b16 %v450, %v449
        %v464 = vpack.c.b16 %v452, %v451
        %v465 = vpack.c.b16 %v454, %v453
        %v466 = vpack.c.b16 %v456, %v455
        %v467 = vpack.c.b16 %v458, %v457
        %v468 = vpack.c.b16 %v460, %v459
        %v470 = vshrl.u32 %v461, 16
        %v472 = vshll.u32 %v461, 16
        %v474 = vrot.slane %v472, 1
        %v475 = vor.u32 %v470, %v474
        %v477 = vshrl.u32 %v462, 16
        %v479 = vshll.u32 %v462, 16
        %v481 = vrot.slane %v479, 1
        %v482 = vor.u32 %v477, %v481
        %v484 = vshrl.u32 %v463, 16
        %v486 = vshll.u32 %v463, 16
        %v488 = vrot.slane %v486, 1
        %v489 = vor.u32 %v484, %v488
        %v491 = vshrl.u32 %v464, 16
        %v493 = vshll.u32 %v464, 16
        %v495 = vrot.slane %v493, 1
        %v496 = vor.u32 %v491, %v495
        %v498 = vshrl.u32 %v465, 16
        %v500 = vshll.u32 %v465, 16
        %v502 = vrot.slane %v500, 1
        %v503 = vor.u32 %v498, %v502
        %v505 = vshrl.u32 %v466, 16
        %v507 = vshll.u32 %v466, 16
        %v509 = vrot.slane %v507, 1
        %v510 = vor.u32 %v505, %v509
        %v512 = vshrl.u32 %v467, 16
        %v514 = vshll.u32 %v467, 16
        %v516 = vrot.slane %v514, 1
        %v517 = vor.u32 %v512, %v516
        %v519 = vshrl.u32 %v468, 16
        %v521 = vshll.u32 %v468, 16
        %v523 = vrot.slane %v521, 1
        %v524 = vor.u32 %v519, %v523
        %v541 = vunpack.c.l.b16 %v400
        %v542 = vunpack.c.l.b16 %v401
        %v543 = vunpack.c.l.b16 %v402
        %v544 = vunpack.c.l.b16 %v403
        %v545 = vunpack.c.l.b16 %v404
        %v546 = vunpack.c.l.b16 %v405
        %v547 = vunpack.c.l.b16 %v406
        %v548 = vunpack.c.l.b16 %v407
        %v549 = vunpack.c.l.b16 %v408
        %v550 = vunpack.c.l.b16 %v409
        %v551 = vunpack.c.l.b16 %v410
        %v552 = vunpack.c.l.b16 %v411
        %v553 = vunpack.c.l.b16 %v412
        %v554 = vunpack.c.l.b16 %v413
        %v555 = vunpack.c.l.b16 %v414
        %v556 = vunpack.c.l.b16 %v415
        %v557 = vpack.c.b16 %v542, %v541
        %v558 = vpack.c.b16 %v544, %v543
        %v559 = vpack.c.b16 %v546, %v545
        %v560 = vpack.c.b16 %v548, %v547
        %v561 = vpack.c.b16 %v550, %v549
        %v562 = vpack.c.b16 %v552, %v551
        %v563 = vpack.c.b16 %v554, %v553
        %v564 = vpack.c.b16 %v556, %v555
        %v566 = vshrl.u32 %v557, 16
        %v568 = vshll.u32 %v557, 16
        %v570 = vrot.slane %v568, 1
        %v571 = vor.u32 %v566, %v570
        %v573 = vshrl.u32 %v558, 16
        %v575 = vshll.u32 %v558, 16
        %v577 = vrot.slane %v575, 1
        %v578 = vor.u32 %v573, %v577
        %v580 = vshrl.u32 %v559, 16
        %v582 = vshll.u32 %v559, 16
        %v584 = vrot.slane %v582, 1
        %v585 = vor.u32 %v580, %v584
        %v587 = vshrl.u32 %v560, 16
        %v589 = vshll.u32 %v560, 16
        %v591 = vrot.slane %v589, 1
        %v592 = vor.u32 %v587, %v591
        %v594 = vshrl.u32 %v561, 16
        %v596 = vshll.u32 %v561, 16
        %v598 = vrot.slane %v596, 1
        %v599 = vor.u32 %v594, %v598
        %v601 = vshrl.u32 %v562, 16
        %v603 = vshll.u32 %v562, 16
        %v605 = vrot.slane %v603, 1
        %v606 = vor.u32 %v601, %v605
        %v608 = vshrl.u32 %v563, 16
        %v610 = vshll.u32 %v563, 16
        %v612 = vrot.slane %v610, 1
        %v613 = vor.u32 %v608, %v612
        %v615 = vshrl.u32 %v564, 16
        %v617 = vshll.u32 %v564, 16
        %v619 = vrot.slane %v617, 1
        %v620 = vor.u32 %v615, %v619
        %v623 = vunpack.c.l.b16 %v425
        %v624 = vunpack.c.l.b16 %v426
        %v625 = vpack.c.b16 %v624, %v623
        %v627 = vshrl.u32 %v625, 16
        %v629 = vshll.u32 %v625, 16
        %v631 = vrot.slane %v629, 1
        %v632 = vor.u32 %v627, %v631
        %v650 = vunpack.c.l.b16 %v391
        %v651 = vunpack.c.l.b16 %v475
        %v652 = vunpack.c.l.b16 %v417
        %v653 = vunpack.c.l.b16 %v571
        %v654 = vunpack.c.l.b16 %v392
        %v655 = vunpack.c.l.b16 %v482
        %v656 = vunpack.c.l.b16 %v418
        %v657 = vunpack.c.l.b16 %v578
        %v658 = vunpack.c.l.b16 %v393
        %v659 = vunpack.c.l.b16 %v489
        %v660 = vunpack.c.l.b16 %v419
        %v661 = vunpack.c.l.b16 %v585
        %v662 = vunpack.c.l.b16 %v394
        %v663 = vunpack.c.l.b16 %v496
        %v664 = vunpack.c.l.b16 %v420
        %v665 = vunpack.c.l.b16 %v592
        %v666 = vunpack.c.l.b16 %v395
        %v667 = vunpack.c.l.b16 %v503
        %v668 = vunpack.c.l.b16 %v421
        %v669 = vunpack.c.l.b16 %v599
        %v670 = vunpack.c.l.b16 %v396
        %v671 = vunpack.c.l.b16 %v510
        %v672 = vunpack.c.l.b16 %v422
        %v673 = vunpack.c.l.b16 %v606
        %v674 = vunpack.c.l.b16 %v397
        %v675 = vunpack.c.l.b16 %v517
        %v676 = vunpack.c.l.b16 %v423
        %v677 = vunpack.c.l.b16 %v613
        %v678 = vunpack.c.l.b16 %v398
        %v679 = vunpack.c.l.b16 %v524
        %v680 = vunpack.c.l.b16 %v424
        %v681 = vunpack.c.l.b16 %v620
        %v682 = vunpack.c.l.b16 %v428
        %v683 = vunpack.c.l.b16 %v632
        %v684 = vld [vmem:[#allocation7] sm:$0xf]
        %v685 = vld [vmem:[#allocation7 + $0x4] sm:$0xf]
        %v686 = vld [vmem:[#allocation7 + $0x8] sm:$0xf]
        %v687 = vld [vmem:[#allocation7 + $0xc] sm:$0xf]
        %v688 = vld [vmem:[#allocation7 + $0x10] sm:$0xf]
        %v689 = vld [vmem:[#allocation7 + $0x14] sm:$0xf]
        %v690 = vld [vmem:[#allocation7 + $0x18] sm:$0xf]
        %v691 = vld [vmem:[#allocation7 + $0x1c] sm:$0xf]
        %v692 = vld [vmem:[#allocation7 + $0x20] sm:$0xf]
        %v693 = vld [vmem:[#allocation7 + $0x24] sm:$0xf]
        %v694 = vld [vmem:[#allocation7 + $0x28] sm:$0xf]
        %v695 = vld [vmem:[#allocation7 + $0x2c] sm:$0xf]
        %v696 = vld [vmem:[#allocation7 + $0x30] sm:$0xf]
        %v697 = vld [vmem:[#allocation7 + $0x34] sm:$0xf]
        %v698 = vld [vmem:[#allocation7 + $0x38] sm:$0xf]
        %v699 = vld [vmem:[#allocation7 + $0x3c] sm:$0xf]
        %v700 = vld [vmem:[#allocation7 + $0x40] sm:$0xf]
        %v701 = vld [vmem:[#allocation7 + $0x44] sm:$0xf]
        %v702 = vld [vmem:[#allocation7 + $0x48] sm:$0xf]
        %v703 = vld [vmem:[#allocation7 + $0x4c] sm:$0xf]
        %v704 = vld [vmem:[#allocation7 + $0x50] sm:$0xf]
        %v705 = vld [vmem:[#allocation7 + $0x54] sm:$0xf]
        %v706 = vld [vmem:[#allocation7 + $0x58] sm:$0xf]
        %v707 = vld [vmem:[#allocation7 + $0x5c] sm:$0xf]
        %v708 = vld [vmem:[#allocation7 + $0x60] sm:$0xf]
        %v709 = vld [vmem:[#allocation7 + $0x64] sm:$0xf]
        %v710 = vld [vmem:[#allocation7 + $0x68] sm:$0xf]
        %v711 = vld [vmem:[#allocation7 + $0x6c] sm:$0xf]
        %v712 = vld [vmem:[#allocation7 + $0x70] sm:$0xf]
        %v713 = vld [vmem:[#allocation7 + $0x74] sm:$0xf]
        %v714 = vld [vmem:[#allocation7 + $0x78] sm:$0xf]
        %v715 = vld [vmem:[#allocation7 + $0x7c] sm:$0xf]
        %v716 = vld [vmem:[#allocation7 + $0x80] sm:$0xf]
        %v717 = vld [vmem:[#allocation7 + $0x84] sm:$0xf]
        %v718 = vld [vmem:[#allocation7 + $0x88] sm:$0xf]
        %v719 = vld [vmem:[#allocation7 + $0x8c] sm:$0xf]
        %v720 = vld [vmem:[#allocation7 + $0x90] sm:$0xf]
        %v721 = vld [vmem:[#allocation7 + $0x94] sm:$0xf]
        %v722 = vld [vmem:[#allocation7 + $0x98] sm:$0xf]
        %v723 = vld [vmem:[#allocation7 + $0x9c] sm:$0xf]
        %v724 = vld [vmem:[#allocation7 + $0xa0] sm:$0xf]
        %v725 = vld [vmem:[#allocation7 + $0xa4] sm:$0xf]
        %v726 = vld [vmem:[#allocation7 + $0xa8] sm:$0xf]
        %v727 = vld [vmem:[#allocation7 + $0xac] sm:$0xf]
        %v728 = vld [vmem:[#allocation7 + $0xb0] sm:$0xf]
        %v729 = vld [vmem:[#allocation7 + $0xb4] sm:$0xf]
        %v730 = vld [vmem:[#allocation7 + $0xb8] sm:$0xf]
        %v731 = vld [vmem:[#allocation7 + $0xbc] sm:$0xf]
        %v732 = vld [vmem:[#allocation7 + $0xc0] sm:$0xf]
        %v733 = vld [vmem:[#allocation7 + $0xc4] sm:$0xf]
        %v734 = vld [vmem:[#allocation7 + $0xc8] sm:$0xf]
        %v735 = vld [vmem:[#allocation7 + $0xcc] sm:$0xf]
        %v736 = vld [vmem:[#allocation7 + $0xd0] sm:$0xf]
        %v737 = vld [vmem:[#allocation7 + $0xd4] sm:$0xf]
        %v738 = vld [vmem:[#allocation7 + $0xd8] sm:$0xf]
        %v739 = vld [vmem:[#allocation7 + $0xdc] sm:$0xf]
        %v740 = vld [vmem:[#allocation7 + $0xe0] sm:$0xf]
        %v741 = vld [vmem:[#allocation7 + $0xe4] sm:$0xf]
        %v742 = vld [vmem:[#allocation7 + $0xe8] sm:$0xf]
        %v743 = vld [vmem:[#allocation7 + $0xec] sm:$0xf]
        %v744 = vld [vmem:[#allocation7 + $0xf0] sm:$0xf]
        %v745 = vld [vmem:[#allocation7 + $0xf4] sm:$0xf]
        %v746 = vld [vmem:[#allocation7 + $0xf8] sm:$0xf]
        %v747 = vld [vmem:[#allocation7 + $0xfc] sm:$0xf]
        %v748 = vld [vmem:[#allocation7 + $0x100] sm:$0xf]
        %v749 = vld [vmem:[#allocation7 + $0x104] sm:$0xf]
        %v750 = vld [vmem:[#allocation7 + $0x108] sm:$0xf]
        %v751 = vld [vmem:[#allocation7 + $0x10c] sm:$0xf]
        %v752 = vld [vmem:[#allocation7 + $0x110] sm:$0xf]
        %v753 = vld [vmem:[#allocation7 + $0x114] sm:$0xf]
        %v754 = vld [vmem:[#allocation7 + $0x118] sm:$0xf]
        %v755 = vld [vmem:[#allocation7 + $0x11c] sm:$0xf]
        %v756 = vld [vmem:[#allocation7 + $0x120] sm:$0xf]
        %v757 = vld [vmem:[#allocation7 + $0x124] sm:$0xf]
        %v758 = vld [vmem:[#allocation7 + $0x128] sm:$0xf]
        %v759 = vld [vmem:[#allocation7 + $0x12c] sm:$0xf]
        %v760 = vld [vmem:[#allocation7 + $0x130] sm:$0xf]
        %v761 = vld [vmem:[#allocation7 + $0x134] sm:$0xf]
        %v762 = vld [vmem:[#allocation7 + $0x138] sm:$0xf]
        %v763 = vld [vmem:[#allocation7 + $0x13c] sm:$0xf]
        %v764 = vld [vmem:[#allocation7 + $0x140] sm:$0xf]
        %v765 = vld [vmem:[#allocation7 + $0x144] sm:$0xf]
        %v766 = vld [vmem:[#allocation7 + $0x148] sm:$0xf]
        %v767 = vld [vmem:[#allocation7 + $0x14c] sm:$0xf]
        %v768 = vld [vmem:[#allocation7 + $0x150] sm:$0xf]
        %v769 = vld [vmem:[#allocation7 + $0x154] sm:$0xf]
        %v770 = vld [vmem:[#allocation7 + $0x158] sm:$0xf]
        %v771 = vld [vmem:[#allocation7 + $0x15c] sm:$0xf]
        %v772 = vld [vmem:[#allocation7 + $0x160] sm:$0xf]
        %v773 = vld [vmem:[#allocation7 + $0x164] sm:$0xf]
        %v774 = vld [vmem:[#allocation7 + $0x168] sm:$0xf]
        %v775 = vld [vmem:[#allocation7 + $0x16c] sm:$0xf]
        %v776 = vld [vmem:[#allocation7 + $0x170] sm:$0xf]
        %v777 = vld [vmem:[#allocation7 + $0x174] sm:$0xf]
        %v778 = vld [vmem:[#allocation7 + $0x178] sm:$0xf]
        %v779 = vld [vmem:[#allocation7 + $0x17c] sm:$0xf]
        %v780 = vld [vmem:[#allocation7 + $0x180] sm:$0xf]
        %v781 = vld [vmem:[#allocation7 + $0x184] sm:$0xf]
        %v782 = vld [vmem:[#allocation7 + $0x188] sm:$0xf]
        %v783 = vld [vmem:[#allocation7 + $0x18c] sm:$0xf]
        %v784 = vld [vmem:[#allocation7 + $0x190] sm:$0xf]
        %v785 = vld [vmem:[#allocation7 + $0x194] sm:$0xf]
        %v786 = vld [vmem:[#allocation7 + $0x198] sm:$0xf]
        %v787 = vld [vmem:[#allocation7 + $0x19c] sm:$0xf]
        %v788 = vld [vmem:[#allocation7 + $0x1a0] sm:$0xf]
        %v789 = vld [vmem:[#allocation7 + $0x1a4] sm:$0xf]
        %v790 = vld [vmem:[#allocation7 + $0x1a8] sm:$0xf]
        %v791 = vld [vmem:[#allocation7 + $0x1ac] sm:$0xf]
        %v792 = vld [vmem:[#allocation7 + $0x1b0] sm:$0xf]
        %v793 = vld [vmem:[#allocation7 + $0x1b4] sm:$0xf]
        %v794 = vld [vmem:[#allocation7 + $0x1b8] sm:$0xf]
        %v795 = vld [vmem:[#allocation7 + $0x1bc] sm:$0xf]
        %v796 = vld [vmem:[#allocation7 + $0x1c0] sm:$0xf]
        %v797 = vld [vmem:[#allocation7 + $0x1c4] sm:$0xf]
        %v798 = vld [vmem:[#allocation7 + $0x1c8] sm:$0xf]
        %v799 = vld [vmem:[#allocation7 + $0x1cc] sm:$0xf]
        %v800 = vld [vmem:[#allocation7 + $0x1d0] sm:$0xf]
        %v801 = vld [vmem:[#allocation7 + $0x1d4] sm:$0xf]
        %v802 = vld [vmem:[#allocation7 + $0x1d8] sm:$0xf]
        %v803 = vld [vmem:[#allocation7 + $0x1dc] sm:$0xf]
        %v804 = vld [vmem:[#allocation7 + $0x1e0] sm:$0xf]
        %v805 = vld [vmem:[#allocation7 + $0x1e4] sm:$0xf]
        %v806 = vld [vmem:[#allocation7 + $0x1e8] sm:$0xf]
        %v807 = vld [vmem:[#allocation7 + $0x1ec] sm:$0xf]
        %v808 = vld [vmem:[#allocation7 + $0x1f0] sm:$0xf]
        %v809 = vld [vmem:[#allocation7 + $0x1f4] sm:$0xf]
        %v810 = vld [vmem:[#allocation7 + $0x1f8] sm:$0xf]
        %v811 = vld [vmem:[#allocation7 + $0x1fc] sm:$0xf]
        %v812 = vld [vmem:[#allocation7 + $0x200] sm:$0xf]
        %v813 = vld [vmem:[#allocation7 + $0x204] sm:$0xf]
        %v814 = vld [vmem:[#allocation7 + $0x208] sm:$0xf]
        %v815 = vld [vmem:[#allocation7 + $0x20c] sm:$0xf]
        %v816 = vld [vmem:[#allocation7 + $0x210] sm:$0xf]
        %v817 = vld [vmem:[#allocation7 + $0x214] sm:$0xf]
        %v818 = vld [vmem:[#allocation7 + $0x218] sm:$0xf]
        %v819 = vld [vmem:[#allocation7 + $0x21c] sm:$0xf]
        %v820 = vld [vmem:[#allocation7 + $0x220] sm:$0xf]
        %v821 = vld [vmem:[#allocation7 + $0x224] sm:$0xf]
        %v822 = vld [vmem:[#allocation7 + $0x228] sm:$0xf]
        %v823 = vld [vmem:[#allocation7 + $0x22c] sm:$0xf]
        %v824 = vld [vmem:[#allocation7 + $0x230] sm:$0xf]
        %v825 = vld [vmem:[#allocation7 + $0x234] sm:$0xf]
        %v826 = vld [vmem:[#allocation7 + $0x238] sm:$0xf]
        %v827 = vld [vmem:[#allocation7 + $0x23c] sm:$0xf]
        %v828 = vld [vmem:[%s3] sm:$0x1]
        %v830 = vperm.slane %v828, 0
        %v832 = vpack.c.b16 %v447, %v445
        %v833 = vpack.c.b16 %v654, %v650
        %v834 = vpack.c.b16 %v655, %v651
        %v835 = vpack.c.b16 %v543, %v541
        %v836 = vpack.c.b16 %v656, %v652
        %v837 = vpack.c.b16 %v657, %v653
        %v838 = vpack.c.b16 %v449, %v447
        %v839 = vpack.c.b16 %v658, %v654
        %v840 = vpack.c.b16 %v659, %v655
        %v841 = vpack.c.b16 %v451, %v449
        %v842 = vpack.c.b16 %v662, %v658
        %v843 = vpack.c.b16 %v663, %v659
        %v844 = vpack.c.b16 %v547, %v545
        %v845 = vpack.c.b16 %v664, %v660
        %v846 = vpack.c.b16 %v665, %v661
        %v847 = vpack.c.b16 %v453, %v451
        %v848 = vpack.c.b16 %v666, %v662
        %v849 = vpack.c.b16 %v667, %v663
        %v850 = vpack.c.b16 %v455, %v453
        %v851 = vpack.c.b16 %v670, %v666
        %v852 = vpack.c.b16 %v671, %v667
        %v853 = vpack.c.b16 %v551, %v549
        %v854 = vpack.c.b16 %v672, %v668
        %v855 = vpack.c.b16 %v673, %v669
        %v856 = vpack.c.b16 %v457, %v455
        %v857 = vpack.c.b16 %v674, %v670
        %v858 = vpack.c.b16 %v675, %v671
        %v859 = vpack.c.b16 %v459, %v457
        %v860 = vpack.c.b16 %v678, %v674
        %v861 = vpack.c.b16 %v679, %v675
        %v862 = vpack.c.b16 %v555, %v553
        %v863 = vpack.c.b16 %v680, %v676
        %v864 = vpack.c.b16 %v681, %v677
        %v865 = vpack.c.b16 %v623, %v459
        %v866 = vpack.c.b16 %v682, %v678
        %v867 = vpack.c.b16 %v683, %v679
        %v1048 = vunpack.c.l.b16 %v684
        %v1049 = vunpack.c.l.b16 %v685
        %v1050 = vunpack.c.l.b16 %v686
        %v1051 = vunpack.c.l.b16 %v687
        %v1052 = vunpack.c.l.b16 %v688
        %v1053 = vunpack.c.l.b16 %v689
        %v1054 = vunpack.c.l.b16 %v690
        %v1055 = vunpack.c.l.b16 %v691
        %v1056 = vunpack.c.l.b16 %v692
        %v1057 = vunpack.c.l.b16 %v693
        %v1058 = vunpack.c.l.b16 %v694
        %v1059 = vunpack.c.l.b16 %v695
        %v1060 = vunpack.c.l.b16 %v696
        %v1061 = vunpack.c.l.b16 %v697
        %v1062 = vunpack.c.l.b16 %v698
        %v1063 = vunpack.c.l.b16 %v699
        %v1064 = vunpack.c.l.b16 %v700
        %v1065 = vunpack.c.l.b16 %v701
        %v1066 = vunpack.c.l.b16 %v702
        %v1067 = vunpack.c.l.b16 %v703
        %v1068 = vunpack.c.l.b16 %v704
        %v1069 = vunpack.c.l.b16 %v705
        %v1070 = vunpack.c.l.b16 %v706
        %v1071 = vunpack.c.l.b16 %v707
        %v1072 = vunpack.c.l.b16 %v708
        %v1073 = vunpack.c.l.b16 %v709
        %v1074 = vunpack.c.l.b16 %v710
        %v1075 = vunpack.c.l.b16 %v711
        %v1076 = vunpack.c.l.b16 %v712
        %v1077 = vunpack.c.l.b16 %v713
        %v1078 = vunpack.c.l.b16 %v714
        %v1079 = vunpack.c.l.b16 %v715
        %v1080 = vunpack.c.l.b16 %v716
        %v1081 = vunpack.c.l.b16 %v717
        %v1082 = vunpack.c.l.b16 %v718
        %v1083 = vunpack.c.l.b16 %v719
        %v1084 = vunpack.c.l.b16 %v720
        %v1085 = vunpack.c.l.b16 %v721
        %v1086 = vunpack.c.l.b16 %v722
        %v1087 = vunpack.c.l.b16 %v723
        %v1088 = vunpack.c.l.b16 %v724
        %v1089 = vunpack.c.l.b16 %v725
        %v1090 = vunpack.c.l.b16 %v726
        %v1091 = vunpack.c.l.b16 %v727
        %v1092 = vunpack.c.l.b16 %v728
        %v1093 = vunpack.c.l.b16 %v729
        %v1094 = vunpack.c.l.b16 %v730
        %v1095 = vunpack.c.l.b16 %v731
        %v1096 = vunpack.c.l.b16 %v732
        %v1097 = vunpack.c.l.b16 %v733
        %v1098 = vunpack.c.l.b16 %v734
        %v1099 = vunpack.c.l.b16 %v735
        %v1100 = vunpack.c.l.b16 %v736
        %v1101 = vunpack.c.l.b16 %v737
        %v1102 = vunpack.c.l.b16 %v738
        %v1103 = vunpack.c.l.b16 %v739
        %v1104 = vunpack.c.l.b16 %v740
        %v1105 = vunpack.c.l.b16 %v741
        %v1106 = vunpack.c.l.b16 %v742
        %v1107 = vunpack.c.l.b16 %v743
        %v1108 = vunpack.c.l.b16 %v744
        %v1109 = vunpack.c.l.b16 %v745
        %v1110 = vunpack.c.l.b16 %v746
        %v1111 = vunpack.c.l.b16 %v747
        %v1112 = vunpack.c.l.b16 %v748
        %v1113 = vunpack.c.l.b16 %v749
        %v1114 = vunpack.c.l.b16 %v750
        %v1115 = vunpack.c.l.b16 %v751
        %v1116 = vunpack.c.l.b16 %v752
        %v1117 = vunpack.c.l.b16 %v753
        %v1118 = vunpack.c.l.b16 %v754
        %v1119 = vunpack.c.l.b16 %v755
        %v1120 = vunpack.c.l.b16 %v756
        %v1121 = vunpack.c.l.b16 %v757
        %v1122 = vunpack.c.l.b16 %v758
        %v1123 = vunpack.c.l.b16 %v759
        %v1124 = vunpack.c.l.b16 %v760
        %v1125 = vunpack.c.l.b16 %v761
        %v1126 = vunpack.c.l.b16 %v762
        %v1127 = vunpack.c.l.b16 %v763
        %v1128 = vunpack.c.l.b16 %v764
        %v1129 = vunpack.c.l.b16 %v765
        %v1130 = vunpack.c.l.b16 %v766
        %v1131 = vunpack.c.l.b16 %v767
        %v1132 = vunpack.c.l.b16 %v768
        %v1133 = vunpack.c.l.b16 %v769
        %v1134 = vunpack.c.l.b16 %v770
        %v1135 = vunpack.c.l.b16 %v771
        %v1136 = vunpack.c.l.b16 %v772
        %v1137 = vunpack.c.l.b16 %v773
        %v1138 = vunpack.c.l.b16 %v774
        %v1139 = vunpack.c.l.b16 %v775
        %v1140 = vunpack.c.l.b16 %v776
        %v1141 = vunpack.c.l.b16 %v777
        %v1142 = vunpack.c.l.b16 %v778
        %v1143 = vunpack.c.l.b16 %v779
        %v1144 = vunpack.c.l.b16 %v780
        %v1145 = vunpack.c.l.b16 %v781
        %v1146 = vunpack.c.l.b16 %v782
        %v1147 = vunpack.c.l.b16 %v783
        %v1148 = vunpack.c.l.b16 %v784
        %v1149 = vunpack.c.l.b16 %v785
        %v1150 = vunpack.c.l.b16 %v786
        %v1151 = vunpack.c.l.b16 %v787
        %v1152 = vunpack.c.l.b16 %v788
        %v1153 = vunpack.c.l.b16 %v789
        %v1154 = vunpack.c.l.b16 %v790
        %v1155 = vunpack.c.l.b16 %v791
        %v1156 = vunpack.c.l.b16 %v792
        %v1157 = vunpack.c.l.b16 %v793
        %v1158 = vunpack.c.l.b16 %v794
        %v1159 = vunpack.c.l.b16 %v795
        %v1160 = vunpack.c.l.b16 %v796
        %v1161 = vunpack.c.l.b16 %v797
        %v1162 = vunpack.c.l.b16 %v798
        %v1163 = vunpack.c.l.b16 %v799
        %v1164 = vunpack.c.l.b16 %v800
        %v1165 = vunpack.c.l.b16 %v801
        %v1166 = vunpack.c.l.b16 %v802
        %v1167 = vunpack.c.l.b16 %v803
        %v1168 = vunpack.c.l.b16 %v804
        %v1169 = vunpack.c.l.b16 %v805
        %v1170 = vunpack.c.l.b16 %v806
        %v1171 = vunpack.c.l.b16 %v807
        %v1172 = vunpack.c.l.b16 %v808
        %v1173 = vunpack.c.l.b16 %v809
        %v1174 = vunpack.c.l.b16 %v810
        %v1175 = vunpack.c.l.b16 %v811
        %v1176 = vunpack.c.l.b16 %v812
        %v1177 = vunpack.c.l.b16 %v813
        %v1178 = vunpack.c.l.b16 %v814
        %v1179 = vunpack.c.l.b16 %v815
        %v1180 = vunpack.c.l.b16 %v816
        %v1181 = vunpack.c.l.b16 %v817
        %v1182 = vunpack.c.l.b16 %v818
        %v1183 = vunpack.c.l.b16 %v819
        %v1184 = vunpack.c.l.b16 %v820
        %v1185 = vunpack.c.l.b16 %v821
        %v1186 = vunpack.c.l.b16 %v822
        %v1187 = vunpack.c.l.b16 %v823
        %v1188 = vunpack.c.l.b16 %v824
        %v1189 = vunpack.c.l.b16 %v825
        %v1190 = vunpack.c.l.b16 %v826
        %v1191 = vunpack.c.l.b16 %v827
        %v1192 = vpack.c.b16 %v1049, %v1048
        %v1193 = vpack.c.b16 %v1051, %v1050
        %v1194 = vpack.c.b16 %v1053, %v1052
        %v1195 = vpack.c.b16 %v1055, %v1054
        %v1196 = vpack.c.b16 %v1057, %v1056
        %v1197 = vpack.c.b16 %v1059, %v1058
        %v1198 = vpack.c.b16 %v1061, %v1060
        %v1199 = vpack.c.b16 %v1063, %v1062
        %v1200 = vpack.c.b16 %v1065, %v1064
        %v1201 = vpack.c.b16 %v1067, %v1066
        %v1202 = vpack.c.b16 %v1069, %v1068
        %v1203 = vpack.c.b16 %v1071, %v1070
        %v1204 = vpack.c.b16 %v1073, %v1072
        %v1205 = vpack.c.b16 %v1075, %v1074
        %v1206 = vpack.c.b16 %v1077, %v1076
        %v1207 = vpack.c.b16 %v1079, %v1078
        %v1208 = vpack.c.b16 %v1081, %v1080
        %v1209 = vpack.c.b16 %v1083, %v1082
        %v1210 = vpack.c.b16 %v1085, %v1084
        %v1211 = vpack.c.b16 %v1087, %v1086
        %v1212 = vpack.c.b16 %v1089, %v1088
        %v1213 = vpack.c.b16 %v1091, %v1090
        %v1214 = vpack.c.b16 %v1093, %v1092
        %v1215 = vpack.c.b16 %v1095, %v1094
        %v1216 = vpack.c.b16 %v1097, %v1096
        %v1217 = vpack.c.b16 %v1099, %v1098
        %v1218 = vpack.c.b16 %v1101, %v1100
        %v1219 = vpack.c.b16 %v1103, %v1102
        %v1220 = vpack.c.b16 %v1105, %v1104
        %v1221 = vpack.c.b16 %v1107, %v1106
        %v1222 = vpack.c.b16 %v1109, %v1108
        %v1223 = vpack.c.b16 %v1111, %v1110
        %v1224 = vpack.c.b16 %v1113, %v1112
        %v1225 = vpack.c.b16 %v1115, %v1114
        %v1226 = vpack.c.b16 %v1117, %v1116
        %v1227 = vpack.c.b16 %v1119, %v1118
        %v1228 = vpack.c.b16 %v1121, %v1120
        %v1229 = vpack.c.b16 %v1123, %v1122
        %v1230 = vpack.c.b16 %v1125, %v1124
        %v1231 = vpack.c.b16 %v1127, %v1126
        %v1232 = vpack.c.b16 %v1129, %v1128
        %v1233 = vpack.c.b16 %v1131, %v1130
        %v1234 = vpack.c.b16 %v1133, %v1132
        %v1235 = vpack.c.b16 %v1135, %v1134
        %v1236 = vpack.c.b16 %v1137, %v1136
        %v1237 = vpack.c.b16 %v1139, %v1138
        %v1238 = vpack.c.b16 %v1141, %v1140
        %v1239 = vpack.c.b16 %v1143, %v1142
        %v1240 = vpack.c.b16 %v1145, %v1144
        %v1241 = vpack.c.b16 %v1147, %v1146
        %v1242 = vpack.c.b16 %v1149, %v1148
        %v1243 = vpack.c.b16 %v1151, %v1150
        %v1244 = vpack.c.b16 %v1153, %v1152
        %v1245 = vpack.c.b16 %v1155, %v1154
        %v1246 = vpack.c.b16 %v1157, %v1156
        %v1247 = vpack.c.b16 %v1159, %v1158
        %v1248 = vpack.c.b16 %v1161, %v1160
        %v1249 = vpack.c.b16 %v1163, %v1162
        %v1250 = vpack.c.b16 %v1165, %v1164
        %v1251 = vpack.c.b16 %v1167, %v1166
        %v1252 = vpack.c.b16 %v1169, %v1168
        %v1253 = vpack.c.b16 %v1171, %v1170
        %v1254 = vpack.c.b16 %v1173, %v1172
        %v1255 = vpack.c.b16 %v1175, %v1174
        %v1256 = vpack.c.b16 %v1177, %v1176
        %v1257 = vpack.c.b16 %v1179, %v1178
        %v1258 = vpack.c.b16 %v1181, %v1180
        %v1259 = vpack.c.b16 %v1183, %v1182
        %v1260 = vpack.c.b16 %v1185, %v1184
        %v1261 = vpack.c.b16 %v1187, %v1186
        %v1262 = vpack.c.b16 %v1189, %v1188
        %v1263 = vpack.c.b16 %v1191, %v1190
        %1336 = vmatpush.bf16.msra.mxu0 %v1199
        %1337 = vmatpush.bf16.msra.mxu0 %v1198
        %1338 = vmatpush.bf16.msra.mxu0 %v1197
        %1339 = vmatpush.bf16.msra.mxu0 %v1196
        %1340 = vmatpush.bf16.msra.mxu0 %v1195
        %1341 = vmatpush.bf16.msra.mxu0 %v1194
        %1342 = vmatpush.bf16.msra.mxu0 %v1193
        %1343 = vmatpush.bf16.msra.mxu0 %v1192
        %1344 = vmatmul.bf16.gmra.mxu0 %v832
        %v1345 = vpop.f32.mrf.mxu0
        %v1346 = vadd.f32 %v830, %v1345
        %v1347 = vpop.f32.mrf.mxu0
        %v1348 = vadd.f32 %v830, %v1347
        %1349 = vmatmul.bf16.gmra.mxu0 %v841
        %v1350 = vpop.f32.mrf.mxu0
        %v1351 = vadd.f32 %v830, %v1350
        %v1352 = vpop.f32.mrf.mxu0
        %v1353 = vadd.f32 %v830, %v1352
        %1354 = vmatmul.bf16.gmra.mxu0 %v850
        %v1355 = vpop.f32.mrf.mxu0
        %v1356 = vadd.f32 %v830, %v1355
        %v1357 = vpop.f32.mrf.mxu0
        %v1358 = vadd.f32 %v830, %v1357
        %1359 = vmatmul.bf16.gmra.mxu0 %v859
        %v1360 = vpop.f32.mrf.mxu0
        %v1361 = vadd.f32 %v830, %v1360
        %v1362 = vpop.f32.mrf.mxu0
        %v1363 = vadd.f32 %v830, %v1362
        %1364 = vdwg.mxu0
        %1365 = vmatpush.bf16.msra.mxu0 %v1207
        %1366 = vmatpush.bf16.msra.mxu0 %v1206
        %1367 = vmatpush.bf16.msra.mxu0 %v1205
        %1368 = vmatpush.bf16.msra.mxu0 %v1204
        %1369 = vmatpush.bf16.msra.mxu0 %v1203
        %1370 = vmatpush.bf16.msra.mxu0 %v1202
        %1371 = vmatpush.bf16.msra.mxu0 %v1201
        %1372 = vmatpush.bf16.msra.mxu0 %v1200
        %1373 = vmatmul.bf16.gmra.mxu0 %v833
        %v1374 = vpop.f32.mrf.mxu0
        %v1375 = vadd.f32 %v1346, %v1374
        %v1376 = vpop.f32.mrf.mxu0
        %v1377 = vadd.f32 %v1348, %v1376
        %1378 = vmatmul.bf16.gmra.mxu0 %v842
        %v1379 = vpop.f32.mrf.mxu0
        %v1380 = vadd.f32 %v1351, %v1379
        %v1381 = vpop.f32.mrf.mxu0
        %v1382 = vadd.f32 %v1353, %v1381
        %1383 = vmatmul.bf16.gmra.mxu0 %v851
        %v1384 = vpop.f32.mrf.mxu0
        %v1385 = vadd.f32 %v1356, %v1384
        %v1386 = vpop.f32.mrf.mxu0
        %v1387 = vadd.f32 %v1358, %v1386
        %1388 = vmatmul.bf16.gmra.mxu0 %v860
        %v1389 = vpop.f32.mrf.mxu0
        %v1390 = vadd.f32 %v1361, %v1389
        %v1391 = vpop.f32.mrf.mxu0
        %v1392 = vadd.f32 %v1363, %v1391
        %1393 = vdwg.mxu0
        %1394 = vmatpush.bf16.msra.mxu0 %v1215
        %1395 = vmatpush.bf16.msra.mxu0 %v1214
        %1396 = vmatpush.bf16.msra.mxu0 %v1213
        %1397 = vmatpush.bf16.msra.mxu0 %v1212
        %1398 = vmatpush.bf16.msra.mxu0 %v1211
        %1399 = vmatpush.bf16.msra.mxu0 %v1210
        %1400 = vmatpush.bf16.msra.mxu0 %v1209
        %1401 = vmatpush.bf16.msra.mxu0 %v1208
        %1402 = vmatmul.bf16.gmra.mxu0 %v834
        %v1403 = vpop.f32.mrf.mxu0
        %v1404 = vadd.f32 %v1375, %v1403
        %v1405 = vpop.f32.mrf.mxu0
        %v1406 = vadd.f32 %v1377, %v1405
        %1407 = vmatmul.bf16.gmra.mxu0 %v843
        %v1408 = vpop.f32.mrf.mxu0
        %v1409 = vadd.f32 %v1380, %v1408
        %v1410 = vpop.f32.mrf.mxu0
        %v1411 = vadd.f32 %v1382, %v1410
        %1412 = vmatmul.bf16.gmra.mxu0 %v852
        %v1413 = vpop.f32.mrf.mxu0
        %v1414 = vadd.f32 %v1385, %v1413
        %v1415 = vpop.f32.mrf.mxu0
        %v1416 = vadd.f32 %v1387, %v1415
        %1417 = vmatmul.bf16.gmra.mxu0 %v861
        %v1418 = vpop.f32.mrf.mxu0
        %v1419 = vadd.f32 %v1390, %v1418
        %v1420 = vpop.f32.mrf.mxu0
        %v1421 = vadd.f32 %v1392, %v1420
        %1422 = vdwg.mxu0
        %1423 = vmatpush.bf16.msra.mxu0 %v1223
        %1424 = vmatpush.bf16.msra.mxu0 %v1222
        %1425 = vmatpush.bf16.msra.mxu0 %v1221
        %1426 = vmatpush.bf16.msra.mxu0 %v1220
        %1427 = vmatpush.bf16.msra.mxu0 %v1219
        %1428 = vmatpush.bf16.msra.mxu0 %v1218
        %1429 = vmatpush.bf16.msra.mxu0 %v1217
        %1430 = vmatpush.bf16.msra.mxu0 %v1216
        %1431 = vmatmul.bf16.gmra.mxu0 %v835
        %v1432 = vpop.f32.mrf.mxu0
        %v1433 = vadd.f32 %v1404, %v1432
        %v1434 = vpop.f32.mrf.mxu0
        %v1435 = vadd.f32 %v1406, %v1434
        %1436 = vmatmul.bf16.gmra.mxu0 %v844
        %v1437 = vpop.f32.mrf.mxu0
        %v1438 = vadd.f32 %v1409, %v1437
        %v1439 = vpop.f32.mrf.mxu0
        %v1440 = vadd.f32 %v1411, %v1439
        %1441 = vmatmul.bf16.gmra.mxu0 %v853
        %v1442 = vpop.f32.mrf.mxu0
        %v1443 = vadd.f32 %v1414, %v1442
        %v1444 = vpop.f32.mrf.mxu0
        %v1445 = vadd.f32 %v1416, %v1444
        %1446 = vmatmul.bf16.gmra.mxu0 %v862
        %v1447 = vpop.f32.mrf.mxu0
        %v1448 = vadd.f32 %v1419, %v1447
        %v1449 = vpop.f32.mrf.mxu0
        %v1450 = vadd.f32 %v1421, %v1449
        %1451 = vdwg.mxu0
        %1452 = vmatpush.bf16.msra.mxu0 %v1231
        %1453 = vmatpush.bf16.msra.mxu0 %v1230
        %1454 = vmatpush.bf16.msra.mxu0 %v1229
        %1455 = vmatpush.bf16.msra.mxu0 %v1228
        %1456 = vmatpush.bf16.msra.mxu0 %v1227
        %1457 = vmatpush.bf16.msra.mxu0 %v1226
        %1458 = vmatpush.bf16.msra.mxu0 %v1225
        %1459 = vmatpush.bf16.msra.mxu0 %v1224
        %1460 = vmatmul.bf16.gmra.mxu0 %v836
        %v1461 = vpop.f32.mrf.mxu0
        %v1462 = vadd.f32 %v1433, %v1461
        %v1463 = vpop.f32.mrf.mxu0
        %v1464 = vadd.f32 %v1435, %v1463
        %1465 = vmatmul.bf16.gmra.mxu0 %v845
        %v1466 = vpop.f32.mrf.mxu0
        %v1467 = vadd.f32 %v1438, %v1466
        %v1468 = vpop.f32.mrf.mxu0
        %v1469 = vadd.f32 %v1440, %v1468
        %1470 = vmatmul.bf16.gmra.mxu0 %v854
        %v1471 = vpop.f32.mrf.mxu0
        %v1472 = vadd.f32 %v1443, %v1471
        %v1473 = vpop.f32.mrf.mxu0
        %v1474 = vadd.f32 %v1445, %v1473
        %1475 = vmatmul.bf16.gmra.mxu0 %v863
        %v1476 = vpop.f32.mrf.mxu0
        %v1477 = vadd.f32 %v1448, %v1476
        %v1478 = vpop.f32.mrf.mxu0
        %v1479 = vadd.f32 %v1450, %v1478
        %1480 = vdwg.mxu0
        %1481 = vmatpush.bf16.msra.mxu0 %v1239
        %1482 = vmatpush.bf16.msra.mxu0 %v1238
        %1483 = vmatpush.bf16.msra.mxu0 %v1237
        %1484 = vmatpush.bf16.msra.mxu0 %v1236
        %1485 = vmatpush.bf16.msra.mxu0 %v1235
        %1486 = vmatpush.bf16.msra.mxu0 %v1234
        %1487 = vmatpush.bf16.msra.mxu0 %v1233
        %1488 = vmatpush.bf16.msra.mxu0 %v1232
        %1489 = vmatmul.bf16.gmra.mxu0 %v837
        %v1490 = vpop.f32.mrf.mxu0
        %v1491 = vadd.f32 %v1462, %v1490
        %v1492 = vpop.f32.mrf.mxu0
        %v1493 = vadd.f32 %v1464, %v1492
        %1494 = vmatmul.bf16.gmra.mxu0 %v846
        %v1495 = vpop.f32.mrf.mxu0
        %v1496 = vadd.f32 %v1467, %v1495
        %v1497 = vpop.f32.mrf.mxu0
        %v1498 = vadd.f32 %v1469, %v1497
        %1499 = vmatmul.bf16.gmra.mxu0 %v855
        %v1500 = vpop.f32.mrf.mxu0
        %v1501 = vadd.f32 %v1472, %v1500
        %v1502 = vpop.f32.mrf.mxu0
        %v1503 = vadd.f32 %v1474, %v1502
        %1504 = vmatmul.bf16.gmra.mxu0 %v864
        %v1505 = vpop.f32.mrf.mxu0
        %v1506 = vadd.f32 %v1477, %v1505
        %v1507 = vpop.f32.mrf.mxu0
        %v1508 = vadd.f32 %v1479, %v1507
        %1509 = vdwg.mxu0
        %1510 = vmatpush.bf16.msra.mxu0 %v1247
        %1511 = vmatpush.bf16.msra.mxu0 %v1246
        %1512 = vmatpush.bf16.msra.mxu0 %v1245
        %1513 = vmatpush.bf16.msra.mxu0 %v1244
        %1514 = vmatpush.bf16.msra.mxu0 %v1243
        %1515 = vmatpush.bf16.msra.mxu0 %v1242
        %1516 = vmatpush.bf16.msra.mxu0 %v1241
        %1517 = vmatpush.bf16.msra.mxu0 %v1240
        %1518 = vmatmul.bf16.gmra.mxu0 %v838
        %v1519 = vpop.f32.mrf.mxu0
        %v1520 = vadd.f32 %v1491, %v1519
        %v1521 = vpop.f32.mrf.mxu0
        %v1522 = vadd.f32 %v1493, %v1521
        %1523 = vmatmul.bf16.gmra.mxu0 %v847
        %v1524 = vpop.f32.mrf.mxu0
        %v1525 = vadd.f32 %v1496, %v1524
        %v1526 = vpop.f32.mrf.mxu0
        %v1527 = vadd.f32 %v1498, %v1526
        %1528 = vmatmul.bf16.gmra.mxu0 %v856
        %v1529 = vpop.f32.mrf.mxu0
        %v1530 = vadd.f32 %v1501, %v1529
        %v1531 = vpop.f32.mrf.mxu0
        %v1532 = vadd.f32 %v1503, %v1531
        %1533 = vmatmul.bf16.gmra.mxu0 %v865
        %v1534 = vpop.f32.mrf.mxu0
        %v1535 = vadd.f32 %v1506, %v1534
        %v1536 = vpop.f32.mrf.mxu0
        %v1537 = vadd.f32 %v1508, %v1536
        %1538 = vdwg.mxu0
        %1539 = vmatpush.bf16.msra.mxu0 %v1255
        %1540 = vmatpush.bf16.msra.mxu0 %v1254
        %1541 = vmatpush.bf16.msra.mxu0 %v1253
        %1542 = vmatpush.bf16.msra.mxu0 %v1252
        %1543 = vmatpush.bf16.msra.mxu0 %v1251
        %1544 = vmatpush.bf16.msra.mxu0 %v1250
        %1545 = vmatpush.bf16.msra.mxu0 %v1249
        %1546 = vmatpush.bf16.msra.mxu0 %v1248
        %1547 = vmatmul.bf16.gmra.mxu0 %v839
        %v1548 = vpop.f32.mrf.mxu0
        %v1549 = vadd.f32 %v1520, %v1548
        %v1550 = vpop.f32.mrf.mxu0
        %v1551 = vadd.f32 %v1522, %v1550
        %1552 = vmatmul.bf16.gmra.mxu0 %v848
        %v1553 = vpop.f32.mrf.mxu0
        %v1554 = vadd.f32 %v1525, %v1553
        %v1555 = vpop.f32.mrf.mxu0
        %v1556 = vadd.f32 %v1527, %v1555
        %1557 = vmatmul.bf16.gmra.mxu0 %v857
        %v1558 = vpop.f32.mrf.mxu0
        %v1559 = vadd.f32 %v1530, %v1558
        %v1560 = vpop.f32.mrf.mxu0
        %v1561 = vadd.f32 %v1532, %v1560
        %1562 = vmatmul.bf16.gmra.mxu0 %v866
        %v1563 = vpop.f32.mrf.mxu0
        %v1564 = vadd.f32 %v1535, %v1563
        %v1565 = vpop.f32.mrf.mxu0
        %v1566 = vadd.f32 %v1537, %v1565
        %1567 = vdwg.mxu0
        %1568 = vmatpush.bf16.msra.mxu0 %v1263
        %1569 = vmatpush.bf16.msra.mxu0 %v1262
        %1570 = vmatpush.bf16.msra.mxu0 %v1261
        %1571 = vmatpush.bf16.msra.mxu0 %v1260
        %1572 = vmatpush.bf16.msra.mxu0 %v1259
        %1573 = vmatpush.bf16.msra.mxu0 %v1258
        %1574 = vmatpush.bf16.msra.mxu0 %v1257
        %1575 = vmatpush.bf16.msra.mxu0 %v1256
        %1576 = vmatmul.bf16.gmra.mxu0 %v840
        %v1577 = vpop.f32.mrf.mxu0
        %v1578 = vadd.f32 %v1549, %v1577
        %v1579 = vpop.f32.mrf.mxu0
        %v1580 = vadd.f32 %v1551, %v1579
        %1581 = vmatmul.bf16.gmra.mxu0 %v849
        %v1582 = vpop.f32.mrf.mxu0
        %v1583 = vadd.f32 %v1554, %v1582
        %v1584 = vpop.f32.mrf.mxu0
        %v1585 = vadd.f32 %v1556, %v1584
        %1586 = vmatmul.bf16.gmra.mxu0 %v858
        %v1587 = vpop.f32.mrf.mxu0
        %v1588 = vadd.f32 %v1559, %v1587
        %v1589 = vpop.f32.mrf.mxu0
        %v1590 = vadd.f32 %v1561, %v1589
        %1591 = vmatmul.bf16.gmra.mxu0 %v867
        %v1592 = vpop.f32.mrf.mxu0
        %v1593 = vadd.f32 %v1564, %v1592
        %v1594 = vpop.f32.mrf.mxu0
        %v1595 = vadd.f32 %v1566, %v1594
        %1596 = vdwg.mxu0
        %1597 = vst [vmem:[%s364] sm:$0xff] %v1578
        %1598 = vst [vmem:[%s364 + $0x8] sm:$0xff] %v1580
        %1599 = vst [vmem:[%s364 + $0x10] sm:$0xff] %v1583
        %1600 = vst [vmem:[%s364 + $0x18] sm:$0xff] %v1585
        %1601 = vst [vmem:[%s364 + $0x20] sm:$0xff] %v1588
        %1602 = vst [vmem:[%s364 + $0x28] sm:$0xff] %v1590
        %1603 = vst [vmem:[%s364 + $0x30] sm:$0xff] %v1593
        %1604 = vst [vmem:[%s364 + $0x38] sm:$0xff] %v1595
        %s1605 = sand.u32 %s148, 1
        %s1606 = scalar_lea.sflag [#allocation4], %s1605
        %s1607 = sand.u32 %s148, 1
        %s1608 = smul.addr %s1607, 64
        %s1609 = scalar_lea.vmem [#allocation8], %s1608
        // Predicated region
        $region49: #{tpu_custom_call.1} parent=35 // pred_check
          %p1610 = pneg %p158
        $region50: #{tpu_custom_call.1} parent=35 // pred_check_branch
          %1612 = sbr.rel (%p1610) target = $region52
        $region51: #{tpu_custom_call.1} parent=35 // pred_region
          %s1613 = smul.u32 8, %s29
          %1615 = vsyncadd %s1606, 0
          %s1616 = smul.addr %s28, 8
          %s1617 = sadd.s32 %s1613, %s1616
          %s1618 = smul.addr %s1617, 8
          %s1619 = scalar_lea.hbm %s4, %s1618
          %s1620 = sshll.u32 %s1609, 4
          %s1621 = int_to_ptr.vmem [resolvable:$true] %s1620
          %s1622 = sshll.u32 %s1619, 4
          %s1623 = int_to_ptr.hbm [resolvable:$true] %s1622
          %1628 = dma.vmem_to_hbm [thread:$0]  %s1621, 1024, %s1623, %s1606, 128, 128, 8
        $region52: #{tpu_custom_call.1} parent=35 // pred_fallthru
          _
      $region36: #{tpu_custom_call.1} parent=5 // pred_fallthru
        _
      %p1629 = scmp.le.s32.totalorder 2, %s19
      // Predicated region
      $region53: #{tpu_custom_call.1} parent=5 // pred_check
        %p1630 = pneg %p1629
      $region54: #{tpu_custom_call.1} parent=5 // pred_check_branch
        %1632 = sbr.rel (%p1630) target = $region56
      $region55: #{tpu_custom_call.1} parent=5 // pred_region
        %s1633 = ssub.s32 %s19, 2
        // Predicated region
        $region57: #{tpu_custom_call.1} parent=55 // pred_check
          %p1634 = pneg %p164
        $region58: #{tpu_custom_call.1} parent=55 // pred_check_branch
          %1636 = sbr.rel (%p1634) target = $region60
        $region59: #{tpu_custom_call.1} parent=55 // pred_region
          %s1637 = sand.u32 %s149, 1
          %s1638 = scalar_lea.sflag [#allocation4], %s1637
          %s1639 = sand.u32 %s149, 1
          %s1640 = smul.addr %s1639, 64
          %s1641 = scalar_lea.vmem [#allocation8], %s1640
          %1643 = dma.done %s1638, 1024
        $region60: #{tpu_custom_call.1} parent=55 // pred_fallthru
          _
      $region56: #{tpu_custom_call.1} parent=5 // pred_fallthru
        _
    $region6: #{tpu_custom_call.1} parent=1 // loop_footer
      %s23 = sadd.s32 1, %s19
    $region7: #{tpu_custom_call.1} parent=1 // loop_footer_branch
      %18 = sbr.rel target = $region3
    $region8: #{tpu_custom_call.1} parent=1 // loop_exit
      _
    %1644 = vsyncpa [#allocation3], 1
    %s1645 = scalar_lea.sflag [#allocation3], 1
    %1646 = vsyncpa %s1645, 1
    %1647 = vsyncpa [#allocation6], 1
    %s1648 = scalar_lea.sflag [#allocation6], 1
    %1649 = vsyncpa %s1648, 1
    %1650 = vsyncpa [#allocation4], 1
    %s1651 = scalar_lea.sflag [#allocation4], 1
    %1652 = vsyncpa %s1651, 1

</llo_original>
